<compile_context>
chip_gen: v7x
topology: tpu7x:2x2x1
jax: 0.10.0
libtpu: 0.0.40
codegen_flags: <defaults>
</compile_context>

<pallas_src>
from functools import partial

import jax
import jax.numpy as jnp
from jax import lax
from jax.experimental import pallas as pl
from jax.experimental.pallas import tpu as pltpu


_BIG = 1e30  # sentinel "distance" for padded points (finite: avoids inf*0=nan)


def _chamfer_kernel(a_ref, b_ref, out_ref, row_acc, col_acc, *,
                    tn, tm, n_true, m_true, mask_rows, mask_cols):
    # a_ref: (1, tn, K)  tile of augmented yhat
    # b_ref: (1, K, tm)  tile of augmented y (lane-dense: points along lanes)
    # out_ref: (1, 1, 2) per-batch accumulator [fwd_sum, bwd_sum]
    ni = pl.program_id(1)
    mi = pl.program_id(2)
    n_last = pl.num_programs(1) - 1
    m_last = pl.num_programs(2) - 1

    # Per-batch output accumulator init (block index is constant over n, m).
    @pl.when((ni == 0) & (mi == 0))
    def _init_out():
        out_ref[...] = jnp.zeros_like(out_ref)

    # Per-n-tile init of the running row-min.
    @pl.when(mi == 0)
    def _init_row():
        row_acc[...] = jnp.full(row_acc.shape, jnp.inf, row_acc.dtype)

    a = a_ref[0]                       # (tn, K)
    b = b_ref[0]                       # (K, tm)

    # Single MXU pass: d_ij = a_i.(-2 b_j) + ||a_i||^2 * 1 + 1 * ||b_j||^2
    d = lax.dot_general(
        a, b,
        dimension_numbers=(((1,), (0,)), ((), ())),
        preferred_element_type=jnp.float32)                 # (tn, tm)

    # Forward (yhat -> y): running min over m-tiles.
    row_acc[...] = jnp.minimum(row_acc[...],
                               jnp.min(d, axis=1, keepdims=True))   # (tn, 1)

    # Backward (y -> yhat): per-m-tile col-min, min-accumulated across n-tiles
    # in a sublane-dense (m_tiles, tm) scratch.
    tile_colmin = jnp.min(d, axis=0, keepdims=True)                 # (1, tm)

    @pl.when(ni == 0)
    def _col_init():
        col_acc[pl.ds(mi, 1), :] = tile_colmin

    @pl.when(ni > 0)
    def _col_update():
        col_acc[pl.ds(mi, 1), :] = jnp.minimum(col_acc[pl.ds(mi, 1), :],
                                               tile_colmin)

    lane = lax.broadcasted_iota(jnp.int32, (1, 1, 2), 2)

    # Finalize forward for this n-tile once all m-tiles have been seen.
    @pl.when(mi == m_last)
    def _fwd_finalize():
        row_d = jnp.maximum(row_acc[...], 0.0)                      # (tn, 1)
        if mask_rows:
            ridx = ni * tn + lax.broadcasted_iota(jnp.int32, (tn, 1), 0)
            row_d = jnp.where(ridx < n_true, row_d, 0.0)
        s = jnp.sum(row_d, axis=0, keepdims=True)                   # (1, 1)
        out_ref[...] += jnp.where(lane == 0, s, 0.0)

    # Finalize backward for this m-tile once all n-tiles have been seen.
    @pl.when(ni == n_last)
    def _bwd_finalize():
        col_d = jnp.maximum(col_acc[pl.ds(mi, 1), :], 0.0)          # (1, tm)
        if mask_cols:
            cidx = mi * tm + lax.broadcasted_iota(jnp.int32, (1, tm), 1)
            col_d = jnp.where(cidx < m_true, col_d, 0.0)
        s = jnp.sum(col_d, axis=1, keepdims=True)                   # (1, 1)
        out_ref[...] += jnp.where(lane == 1, s, 0.0)


def _round_up(x, m):
    return (x + m - 1) // m * m


def _pick_tile(padded, candidates):
    for c in candidates:
        if padded % c == 0:
            return c
    return 128  # `padded` is a multiple of 128, so this always divides


@jax.jit
def chamfer_loss(yhat, y):
    """yhat: (B, N, D), y: (B, M, D) -> scalar sqrt(0.5 * bidirectional chamfer)."""
    B, N, D = yhat.shape
    B2, M, D2 = y.shape
    assert B == B2 and D == D2
    K = D + 2

    yhat = yhat.astype(jnp.float32)
    y = y.astype(jnp.float32)

    # Pad point counts to a multiple of 128, then pick the largest dividing
    # tile.  No full-extent fallback: VMEM stays bounded for arbitrary / prime
    # point counts; padded points are masked in-kernel.
    n_pad = _round_up(N, 128)
    m_pad = _round_up(M, 128)
    tn = _pick_tile(n_pad, (512, 384, 256, 128))
    tm = _pick_tile(m_pad, (2048, 1536, 1024, 768, 512, 384, 256, 128))
    n_tiles = n_pad // tn
    m_tiles = m_pad // tm

    # Augmented operands: dot(a_aug_i, b_aug_j) = ||a_i||^2 - 2 a_i.b_j + ||b_j||^2
    # Padded points carry _BIG so they never win a min against real points.
    sq_a = jnp.sum(yhat * yhat, axis=2, keepdims=True)                  # (B, N, 1)
    a_aug = jnp.concatenate(
        [yhat, sq_a, jnp.ones((B, N, 1), jnp.float32)], axis=2)          # (B, N, K)
    if n_pad != N:
        pad = jnp.zeros((B, n_pad - N, K), jnp.float32).at[:, :, D].set(_BIG)
        a_aug = jnp.concatenate([a_aug, pad], axis=1)                    # (B, n_pad, K)

    y_t = jnp.transpose(y, (0, 2, 1))                                    # (B, D, M)
    sq_b = jnp.sum(y_t * y_t, axis=1, keepdims=True)                     # (B, 1, M)
    b_aug = jnp.concatenate(
        [-2.0 * y_t, jnp.ones((B, 1, M), jnp.float32), sq_b], axis=1)    # (B, K, M)
    if m_pad != M:
        pad = jnp.zeros((B, K, m_pad - M), jnp.float32).at[:, D + 1, :].set(_BIG)
        b_aug = jnp.concatenate([b_aug, pad], axis=2)                    # (B, K, m_pad)

    kernel = partial(_chamfer_kernel, tn=tn, tm=tm, n_true=N, m_true=M,
                     mask_rows=(n_pad != N), mask_cols=(m_pad != M))

    out = pl.pallas_call(
        kernel,
        out_shape=jax.ShapeDtypeStruct((B, 1, 2), jnp.float32),
        grid_spec=pltpu.PrefetchScalarGridSpec(
            num_scalar_prefetch=0,
            grid=(B, n_tiles, m_tiles),
            in_specs=[
                pl.BlockSpec((1, tn, K), lambda b, n, m: (b, n, 0)),
                pl.BlockSpec((1, K, tm), lambda b, n, m: (b, 0, m)),
            ],
            out_specs=pl.BlockSpec((1, 1, 2), lambda b, n, m: (b, 0, 0)),
            scratch_shapes=[
                pltpu.VMEM((tn, 1), jnp.float32),        # running row-min
                pltpu.VMEM((m_tiles, tm), jnp.float32),  # per-batch col-min
            ],
        ),
        # n / m are reduction-coupled (backward col-min accumulates across n),
        # so only the batch axis is parallel.
        # TODO(synk): on v7x (2 TCs) a leading size-2 core axis splitting
        # n_tiles (per-core backward col-min partials merged in the wrapper)
        # would use both cores when B is small/odd.
        compiler_params=pltpu.CompilerParams(
            dimension_semantics=("parallel", "arbitrary", "arbitrary"),
            vmem_limit_bytes=48 * 1024 * 1024,   # <= v7x's 64 MiB physical VMEM
        ),
    )(a_aug, b_aug)                                                     # (B, 1, 2)

    fwd_mean = out[:, 0, 0] / N       # point_reduction='mean' (forward)
    bwd_mean = out[:, 0, 1] / M       # point_reduction='mean' (backward)
    loss = jnp.mean(fwd_mean + bwd_mean)   # batch_reduction='mean'
    return jnp.sqrt(0.5 * loss)


def _reference(yhat, y):
    d = jnp.sum((yhat[:, :, None, :] - y[:, None, :, :]) ** 2, axis=-1)  # (B,N,M)
    loss = jnp.mean(jnp.min(d, axis=2).mean(axis=1)
                    + jnp.min(d, axis=1).mean(axis=1))
    return jnp.sqrt(0.5 * loss)


if __name__ == "__main__":
    key = jax.random.PRNGKey(0)
    k1, k2, k3, k4 = jax.random.split(key, 4)

    # Case 1: 128-aligned shapes (single 384x384 tile, no padding path).
    B, N, M, D = 2, 384, 384, 3
    yhat = jax.random.normal(k1, (B, N, D), dtype=jnp.float32)
    y = jax.random.normal(k2, (B, M, D), dtype=jnp.float32)
    out = jax.block_until_ready(chamfer_loss(yhat, y))
    ref = _reference(yhat, y)
    assert jnp.allclose(out, ref, rtol=5e-4, atol=1e-5), (out, ref)

    # Case 2: non-128-aligned, multi-tile on both axes (exercises the padding
    # masks, cross-n col-min accumulation and dynamic col_acc indexing).
    B, N, M, D = 2, 1100, 1300, 3
    yhat = jax.random.normal(k3, (B, N, D), dtype=jnp.float32)
    y = jax.random.normal(k4, (B, M, D), dtype=jnp.float32)
    out = jax.block_until_ready(chamfer_loss(yhat, y))
    ref = _reference(yhat, y)
    assert jnp.allclose(out, ref, rtol=5e-4, atol=1e-5), (out, ref)

    print("KERNEL_OK")
</pallas_src>

<mosaic_0001>
module attributes {stable_mosaic.version = 11 : i64} {
  func.func @_chamfer_kernel(%arg0: i32, %arg1: i32, %arg2: i32, %arg3: memref<1x384x5xf32, #tpu.memory_space<vmem>>, %arg4: memref<1x5x384xf32, #tpu.memory_space<vmem>>, %arg5: memref<1x1x2xf32, #tpu.memory_space<vmem>>, %arg6: memref<384x1xf32, #tpu.memory_space<vmem>>, %arg7: memref<1x384xf32, #tpu.memory_space<vmem>>) attributes {dimension_semantics = [#tpu.dimension_semantics<parallel>, #tpu.dimension_semantics<arbitrary>, #tpu.dimension_semantics<arbitrary>], iteration_bounds = array<i64: 2, 1, 1>, scalar_prefetch = 0 : i64, scratch_operands = 2 : i64, tpu.core_type = #tpu.core_type<tc>, window_params = [{transform_indices = @transform_0, window_bounds = array<i64: 1, 384, 5>}, {transform_indices = @transform_1, window_bounds = array<i64: 1, 5, 384>}, {transform_indices = @transform_2, window_bounds = array<i64: 1, 1, 2>}]} {
    %c0_i32 = arith.constant 0 : i32
    %0 = arith.cmpi eq, %arg1, %c0_i32 : i32
    %c0_i32_0 = arith.constant 0 : i32
    %1 = arith.cmpi eq, %arg2, %c0_i32_0 : i32
    %2 = arith.andi %0, %1 : i1
    %3 = arith.extui %2 : i1 to i32
    %c0_i32_1 = arith.constant 0 : i32
    %4 = arith.cmpi ne, %3, %c0_i32_1 : i32
    scf.if %4 {
      %cst_23 = arith.constant 0.000000e+00 : f32
      %33 = vector.broadcast %cst_23 : f32 to vector<1x1x2xf32>
      %c0_24 = arith.constant 0 : index
      %c0_25 = arith.constant 0 : index
      %c0_26 = arith.constant 0 : index
      %34 = vector.load %arg5[%c0_24, %c0_25, %c0_26] : memref<1x1x2xf32, #tpu.memory_space<vmem>>, vector<1x1x2xf32>
      tpu.vector_store %arg5[%c0_24, %c0_25, %c0_26], %33 {strides = array<i32>} : memref<1x1x2xf32, #tpu.memory_space<vmem>>, vector<1x1x2xf32>,
    } else {
    }
    %c0_i32_2 = arith.constant 0 : i32
    %5 = arith.cmpi eq, %arg2, %c0_i32_2 : i32
    %6 = arith.extui %5 : i1 to i32
    %c0_i32_3 = arith.constant 0 : i32
    %7 = arith.cmpi ne, %6, %c0_i32_3 : i32
    scf.if %7 {
      %cst_23 = arith.constant 0x7F800000 : f32
      %33 = vector.broadcast %cst_23 : f32 to vector<384x1xf32>
      %c0_24 = arith.constant 0 : index
      %c0_25 = arith.constant 0 : index
      %34 = vector.load %arg6[%c0_24, %c0_25] : memref<384x1xf32, #tpu.memory_space<vmem>>, vector<384x1xf32>
      tpu.vector_store %arg6[%c0_24, %c0_25], %33 {strides = array<i32>} : memref<384x1xf32, #tpu.memory_space<vmem>>, vector<384x1xf32>,
    } else {
    }
    %c0 = arith.constant 0 : index
    %c0_4 = arith.constant 0 : index
    %c0_5 = arith.constant 0 : index
    %8 = vector.load %arg3[%c0, %c0_4, %c0_5] : memref<1x384x5xf32, #tpu.memory_space<vmem>>, vector<1x384x5xf32>
    %9 = vector.shape_cast %8 : vector<1x384x5xf32> to vector<384x5xf32>
    %c0_6 = arith.constant 0 : index
    %c0_7 = arith.constant 0 : index
    %c0_8 = arith.constant 0 : index
    %10 = vector.load %arg4[%c0_6, %c0_7, %c0_8] : memref<1x5x384xf32, #tpu.memory_space<vmem>>, vector<1x5x384xf32>
    %11 = vector.shape_cast %10 : vector<1x5x384xf32> to vector<5x384xf32>
    %cst = arith.constant dense<0.000000e+00> : vector<384x384xf32>
    %12 = tpu.matmul %9, %11, %cst {dimension_numbers = #tpu.dot_dimension_numbers<[1], [0], [0], [1], [0, 0, 1, 1], [], []>} : vector<384x5xf32>, vector<5x384xf32>, vector<384x384xf32> -> vector<384x384xf32>
    %c0_9 = arith.constant 0 : index
    %c0_10 = arith.constant 0 : index
    %13 = vector.load %arg6[%c0_9, %c0_10] : memref<384x1xf32, #tpu.memory_space<vmem>>, vector<384x1xf32>
    %cst_11 = arith.constant dense<0x7F800000> : vector<384xf32>
    %14 = vector.multi_reduction <minimumf>, %12, %cst_11 [1] : vector<384x384xf32> to vector<384xf32>
    %15 = vector.shape_cast %14 : vector<384xf32> to vector<384x1xf32>
    %16 = arith.minimumf %13, %15 : vector<384x1xf32>
    %c0_12 = arith.constant 0 : index
    %c0_13 = arith.constant 0 : index
    %17 = vector.load %arg6[%c0_12, %c0_13] : memref<384x1xf32, #tpu.memory_space<vmem>>, vector<384x1xf32>
    tpu.vector_store %arg6[%c0_12, %c0_13], %16 {strides = array<i32>} : memref<384x1xf32, #tpu.memory_space<vmem>>, vector<384x1xf32>,
    %cst_14 = arith.constant dense<0x7F800000> : vector<384xf32>
    %18 = vector.multi_reduction <minimumf>, %12, %cst_14 [0] : vector<384x384xf32> to vector<384xf32>
    %19 = vector.shape_cast %18 : vector<384xf32> to vector<1x384xf32>
    %c0_i32_15 = arith.constant 0 : i32
    %20 = arith.cmpi eq, %arg1, %c0_i32_15 : i32
    %21 = arith.extui %20 : i1 to i32
    %c0_i32_16 = arith.constant 0 : i32
    %22 = arith.cmpi ne, %21, %c0_i32_16 : i32
    scf.if %22 {
      %33 = arith.index_cast %arg2 : i32 to index
      %c0_23 = arith.constant 0 : index
      %34 = vector.load %arg7[%33, %c0_23] : memref<1x384xf32, #tpu.memory_space<vmem>>, vector<1x384xf32>
      tpu.vector_store %arg7[%33, %c0_23], %19 {strides = array<i32>} : memref<1x384xf32, #tpu.memory_space<vmem>>, vector<1x384xf32>,
    } else {
    }
    %c0_i32_17 = arith.constant 0 : i32
    %23 = arith.cmpi sgt, %arg1, %c0_i32_17 : i32
    %24 = arith.extui %23 : i1 to i32
    %c0_i32_18 = arith.constant 0 : i32
    %25 = arith.cmpi ne, %24, %c0_i32_18 : i32
    scf.if %25 {
      %33 = arith.index_cast %arg2 : i32 to index
      %c0_23 = arith.constant 0 : index
      %34 = vector.load %arg7[%33, %c0_23] : memref<1x384xf32, #tpu.memory_space<vmem>>, vector<1x384xf32>
      %35 = arith.minimumf %34, %19 : vector<1x384xf32>
      %36 = arith.index_cast %arg2 : i32 to index
      %c0_24 = arith.constant 0 : index
      %37 = vector.load %arg7[%36, %c0_24] : memref<1x384xf32, #tpu.memory_space<vmem>>, vector<1x384xf32>
      tpu.vector_store %arg7[%36, %c0_24], %35 {strides = array<i32>} : memref<1x384xf32, #tpu.memory_space<vmem>>, vector<1x384xf32>,
    } else {
    }
    %26 = tpu.iota {dimensions = array<i32: 2>} : vector<1x1x2xi32>
    %c0_i32_19 = arith.constant 0 : i32
    %27 = arith.cmpi eq, %arg2, %c0_i32_19 : i32
    %28 = arith.extui %27 : i1 to i32
    %c0_i32_20 = arith.constant 0 : i32
    %29 = arith.cmpi ne, %28, %c0_i32_20 : i32
    scf.if %29 {
      %c0_23 = arith.constant 0 : index
      %c0_24 = arith.constant 0 : index
      %33 = vector.load %arg6[%c0_23, %c0_24] : memref<384x1xf32, #tpu.memory_space<vmem>>, vector<384x1xf32>
      %cst_25 = arith.constant 0.000000e+00 : f32
      %34 = vector.broadcast %cst_25 : f32 to vector<384x1xf32>
      %35 = arith.maximumf %33, %34 : vector<384x1xf32>
      %cst_26 = arith.constant dense<0.000000e+00> : vector<1xf32>
      %36 = vector.multi_reduction <add>, %35, %cst_26 [0] : vector<384x1xf32> to vector<1xf32>
      %37 = vector.shape_cast %36 : vector<1xf32> to vector<1x1xf32>
      %c0_27 = arith.constant 0 : index
      %c0_28 = arith.constant 0 : index
      %c0_29 = arith.constant 0 : index
      %38 = vector.load %arg5[%c0_27, %c0_28, %c0_29] : memref<1x1x2xf32, #tpu.memory_space<vmem>>, vector<1x1x2xf32>
      %c0_i32_30 = arith.constant 0 : i32
      %39 = vector.broadcast %c0_i32_30 : i32 to vector<1x1x2xi32>
      %40 = arith.cmpi eq, %26, %39 : vector<1x1x2xi32>
      %cst_31 = arith.constant 0.000000e+00 : f32
      %41 = vector.shape_cast %37 : vector<1x1xf32> to vector<1x1x1xf32>
      %42 = vector.broadcast %41 : vector<1x1x1xf32> to vector<1x1x2xf32>
      %43 = vector.broadcast %cst_31 : f32 to vector<1x1x2xf32>
      %44 = arith.select %40, %42, %43 : vector<1x1x2xi1>, vector<1x1x2xf32>
      %45 = arith.addf %38, %44 : vector<1x1x2xf32>
      %c0_32 = arith.constant 0 : index
      %c0_33 = arith.constant 0 : index
      %c0_34 = arith.constant 0 : index
      %46 = vector.load %arg5[%c0_32, %c0_33, %c0_34] : memref<1x1x2xf32, #tpu.memory_space<vmem>>, vector<1x1x2xf32>
      tpu.vector_store %arg5[%c0_32, %c0_33, %c0_34], %45 {strides = array<i32>} : memref<1x1x2xf32, #tpu.memory_space<vmem>>, vector<1x1x2xf32>,
    } else {
    }
    %c0_i32_21 = arith.constant 0 : i32
    %30 = arith.cmpi eq, %arg1, %c0_i32_21 : i32
    %31 = arith.extui %30 : i1 to i32
    %c0_i32_22 = arith.constant 0 : i32
    %32 = arith.cmpi ne, %31, %c0_i32_22 : i32
    scf.if %32 {
      %33 = arith.index_cast %arg2 : i32 to index
      %c0_23 = arith.constant 0 : index
      %34 = vector.load %arg7[%33, %c0_23] : memref<1x384xf32, #tpu.memory_space<vmem>>, vector<1x384xf32>
      %cst_24 = arith.constant 0.000000e+00 : f32
      %35 = vector.broadcast %cst_24 : f32 to vector<1x384xf32>
      %36 = arith.maximumf %34, %35 : vector<1x384xf32>
      %cst_25 = arith.constant dense<0.000000e+00> : vector<1xf32>
      %37 = vector.multi_reduction <add>, %36, %cst_25 [1] : vector<1x384xf32> to vector<1xf32>
      %38 = vector.shape_cast %37 : vector<1xf32> to vector<1x1xf32>
      %c0_26 = arith.constant 0 : index
      %c0_27 = arith.constant 0 : index
      %c0_28 = arith.constant 0 : index
      %39 = vector.load %arg5[%c0_26, %c0_27, %c0_28] : memref<1x1x2xf32, #tpu.memory_space<vmem>>, vector<1x1x2xf32>
      %c1_i32 = arith.constant 1 : i32
      %40 = vector.broadcast %c1_i32 : i32 to vector<1x1x2xi32>
      %41 = arith.cmpi eq, %26, %40 : vector<1x1x2xi32>
      %cst_29 = arith.constant 0.000000e+00 : f32
      %42 = vector.shape_cast %38 : vector<1x1xf32> to vector<1x1x1xf32>
      %43 = vector.broadcast %42 : vector<1x1x1xf32> to vector<1x1x2xf32>
      %44 = vector.broadcast %cst_29 : f32 to vector<1x1x2xf32>
      %45 = arith.select %41, %43, %44 : vector<1x1x2xi1>, vector<1x1x2xf32>
      %46 = arith.addf %39, %45 : vector<1x1x2xf32>
      %c0_30 = arith.constant 0 : index
      %c0_31 = arith.constant 0 : index
      %c0_32 = arith.constant 0 : index
      %47 = vector.load %arg5[%c0_30, %c0_31, %c0_32] : memref<1x1x2xf32, #tpu.memory_space<vmem>>, vector<1x1x2xf32>
      tpu.vector_store %arg5[%c0_30, %c0_31, %c0_32], %46 {strides = array<i32>} : memref<1x1x2xf32, #tpu.memory_space<vmem>>, vector<1x1x2xf32>,
    } else {
    }
    return
  }
  func.func @transform_0(%arg0: i32, %arg1: i32, %arg2: i32) -> (i32, i32, i32) {
    %c0_i32 = arith.constant 0 : i32
    %c0_i32_0 = arith.constant 0 : i32
    return %arg0, %arg1, %c0_i32 : i32, i32, i32
  }
  func.func @transform_1(%arg0: i32, %arg1: i32, %arg2: i32) -> (i32, i32, i32) {
    %c0_i32 = arith.constant 0 : i32
    %c0_i32_0 = arith.constant 0 : i32
    return %arg0, %c0_i32, %arg2 : i32, i32, i32
  }
  func.func @transform_2(%arg0: i32, %arg1: i32, %arg2: i32) -> (i32, i32, i32) {
    %c0_i32 = arith.constant 0 : i32
    %c0_i32_0 = arith.constant 0 : i32
    %c0_i32_1 = arith.constant 0 : i32
    return %arg0, %c0_i32, %c0_i32_0 : i32, i32, i32
  }
}

</mosaic_0001>

<llo_original>
// kernel: chamfer_loss.1
$region0: #{chamfer_loss.1}
  #allocation0 [shape = 'u32[]', space=smem, size = 0x4, offset = 0x4, fixed_abs, tag = 'smem constant byte address 0x4 - core index']
  #allocation1 [shape = 'u32[144,128]{1,0:T(1,128)}', space=vmem, size = 0x12000, scoped, tag = 'internal scratch']
  #allocation2 [shape = 'f32[384,1]{1,0:T(8,128)}', space=vmem, size = 0x30000, scoped, tag = 'scratch operand']
  #allocation3 [shape = 'f32[1,384]{1,0:T(1,128)}', space=vmem, size = 0x600, scoped, tag = 'scratch operand']
  %s0 = inlined_call_operand.vmem [shape: f32[2,384,5], index: 0, kind: input, shape index: {}]
  %s1 = inlined_call_operand.vmem [shape: f32[2,5,384], index: 1, kind: input, shape index: {}]
  %s2 = inlined_call_operand.vmem [shape: f32[2,1,2], index: 2, kind: output, shape index: {}]
  %s3 = sld [smem:[#allocation0]]
  $region65: #{chamfer_loss.1} parent=0
    _
  %s5 = ssub.s32 1, %s3
  %s6 = scalar_select 0, %s5, %s3
  loop: start=0, step=1, limit=4
  $region2: #{chamfer_loss.1} parent=0 // loop_pre_header
    _
  $region3: #{chamfer_loss.1} parent=0 // loop_header
    %s8 = sphi 0, %s12
    %p9 = scmp.ge.s32.totalorder %s8, 4
    %s15 = sphi 0, %s34
    %s16 = sphi 0, %s30
    %s17 = sphi 0, %s26
    %s18 = sphi 0, %s15
    %s19 = sphi 0, %s16
    %s20 = sphi 0, %s17
    %s21 = sphi 0, %s18
    %s22 = sphi 0, %s19
    %s23 = sphi 0, %s20
    %s39 = sphi 0, %s41
    %s42 = sphi 0, %s39
    %s43 = sphi 0, %s42
    %s59 = sphi 0, %s43
    %s67 = sphi 0, %s69
    %s70 = sphi 0, %s67
    %s71 = sphi 0, %s70
    %s87 = sphi 0, %s71
    %s93 = sphi 0, %s95
    %s96 = sphi 0, %s93
    %s97 = sphi 0, %s96
    %s113 = sphi 0, %s97
  $region4: #{chamfer_loss.1} parent=0 // loop_header_branch
    %11 = sbr.rel (%p9) target = $region8
  $region5: #{chamfer_loss.1} parent=0 // loop_body
    %s13 = ssub.s32 %s8, 1
    %s14 = ssub.s32 %s8, 2
    %s24 = sadd.s32 1, %s17
    %p25 = scmp.ge.s32.totalorder %s24, 1
    %s26 = scalar_select %p25, 0, %s24
    %s27 = sadd.s32 1, %s16
    %s28 = scalar_select %p25, %s27, %s16
    %p29 = scmp.ge.s32.totalorder %s28, 1
    %s30 = scalar_select %p29, 0, %s28
    %s31 = sadd.s32 1, %s15
    %s32 = scalar_select %p29, %s31, %s15
    %p33 = scmp.ge.s32.totalorder %s32, 2
    %s34 = scalar_select %p33, 0, %s32
    %s35 = ssub.s32 %s15, %s34
    %s36 = ssub.s32 %s16, %s30
    %s37 = sor.u32 %s35, %s36
    %p38 = scmp.eq.s32.totalorder %s37, 0
    %s40 = sadd.s32 %s39, 1
    %s41 = scalar_select %p38, %s39, %s40
    %p44 = pneg %p38
    %p45 = scmp.eq.s32.totalorder %s8, 1
    %p46 = por %p44, %p45
    %p47 = scmp.ne.s32.totalorder %s39, %s42
    %p48 = scmp.eq.s32.totalorder %s8, 0
    %p49 = por %p47, %p48
    %p50 = scmp.ne.s32.totalorder %s39, %s42
    %p51 = scmp.eq.s32.totalorder %s13, 1
    %p52 = por %p50, %p51
    %p53 = scmp.ne.s32.totalorder %s42, %s43
    %p54 = scmp.eq.s32.totalorder %s13, 0
    %p55 = por %p53, %p54
    %p56 = scmp.ne.s32.totalorder %s42, %s43
    %p57 = scmp.eq.s32.totalorder %s14, 1
    %p58 = por %p56, %p57
    %p60 = scmp.ne.s32.totalorder %s43, %s59
    %p61 = scmp.eq.s32.totalorder %s14, 0
    %p62 = por %p60, %p61
    %s63 = ssub.s32 %s15, %s34
    %s64 = ssub.s32 %s17, %s26
    %s65 = sor.u32 %s63, %s64
    %p66 = scmp.eq.s32.totalorder %s65, 0
    %s68 = sadd.s32 %s67, 1
    %s69 = scalar_select %p66, %s67, %s68
    %p72 = pneg %p66
    %p73 = scmp.eq.s32.totalorder %s8, 1
    %p74 = por %p72, %p73
    %p75 = scmp.ne.s32.totalorder %s67, %s70
    %p76 = scmp.eq.s32.totalorder %s8, 0
    %p77 = por %p75, %p76
    %p78 = scmp.ne.s32.totalorder %s67, %s70
    %p79 = scmp.eq.s32.totalorder %s13, 1
    %p80 = por %p78, %p79
    %p81 = scmp.ne.s32.totalorder %s70, %s71
    %p82 = scmp.eq.s32.totalorder %s13, 0
    %p83 = por %p81, %p82
    %p84 = scmp.ne.s32.totalorder %s70, %s71
    %p85 = scmp.eq.s32.totalorder %s14, 1
    %p86 = por %p84, %p85
    %p88 = scmp.ne.s32.totalorder %s71, %s87
    %p89 = scmp.eq.s32.totalorder %s14, 0
    %p90 = por %p88, %p89
    %s91 = ssub.s32 %s15, %s34
    %p92 = scmp.eq.s32.totalorder %s91, 0
    %s94 = sadd.s32 %s93, 1
    %s95 = scalar_select %p92, %s93, %s94
    %p98 = pneg %p92
    %p99 = scmp.eq.s32.totalorder %s8, 1
    %p100 = por %p98, %p99
    %p101 = scmp.ne.s32.totalorder %s93, %s96
    %p102 = scmp.eq.s32.totalorder %s8, 0
    %p103 = por %p101, %p102
    %p104 = scmp.ne.s32.totalorder %s93, %s96
    %p105 = scmp.eq.s32.totalorder %s13, 1
    %p106 = por %p104, %p105
    %p107 = scmp.ne.s32.totalorder %s96, %s97
    %p108 = scmp.eq.s32.totalorder %s13, 0
    %p109 = por %p107, %p108
    %p110 = scmp.ne.s32.totalorder %s96, %s97
    %p111 = scmp.eq.s32.totalorder %s14, 1
    %p112 = por %p110, %p111
    %p114 = scmp.ne.s32.totalorder %s97, %s113
    %p115 = scmp.eq.s32.totalorder %s14, 0
    %p116 = por %p114, %p115
    %p117 = scmp.le.s32.totalorder 1, %s8
    %p118 = scmp.lt.s32.totalorder %s8, 3
    %p119 = pnand %p117, %p118
    %p120 = pneg %p119
    // Predicated region
    $region9: #{chamfer_loss.1} parent=5 // pred_check
      _
    $region10: #{chamfer_loss.1} parent=5 // pred_check_branch
      %122 = sbr.rel (%p119) target = $region12
    $region11: #{chamfer_loss.1} parent=5 // pred_region
      %s123 = ssub.s32 %s8, 1
    $region12: #{chamfer_loss.1} parent=5 // pred_fallthru
      _
    %p124 = scmp.lt.s32.totalorder %s8, 2
    // Predicated region
    $region13: #{chamfer_loss.1} parent=5 // pred_check
      %p125 = pneg %p124
    $region14: #{chamfer_loss.1} parent=5 // pred_check_branch
      %127 = sbr.rel (%p125) target = $region16
    $region15: #{chamfer_loss.1} parent=5 // pred_region
      // Predicated region
      $region17: #{chamfer_loss.1} parent=15 // pred_check
        %p128 = pneg %p49
      $region18: #{chamfer_loss.1} parent=15 // pred_check_branch
        %130 = sbr.rel (%p128) target = $region20
      $region19: #{chamfer_loss.1} parent=15 // pred_region
        %s131 = smul.u32 48, %s16
        %p132 = scmp.lt.s32.totalorder %s15, 1
        %s133 = scalar_select %p132, %s15, 1
        %p134 = scmp.lt.s32.totalorder %s131, 47
        %s135 = scalar_select %p134, %s131, 47
        %s136 = smul.addr %s133, 48
        %s137 = sadd.s32 %s135, %s136
        %s138 = smul.addr %s137, 8
        %s139 = scalar_lea.vmem %s0, %s138
        %s140 = smul.u32 48, %s16
      $region20: #{chamfer_loss.1} parent=15 // pred_fallthru
        _
      // Predicated region
      $region21: #{chamfer_loss.1} parent=15 // pred_check
        %p141 = pneg %p77
      $region22: #{chamfer_loss.1} parent=15 // pred_check_branch
        %143 = sbr.rel (%p141) target = $region24
      $region23: #{chamfer_loss.1} parent=15 // pred_region
        %s144 = smul.u32 3, %s17
        %p145 = scmp.lt.s32.totalorder %s15, 1
        %s146 = scalar_select %p145, %s15, 1
        %p147 = scmp.lt.s32.totalorder %s144, 2
        %s148 = scalar_select %p147, %s144, 2
        %s149 = smul.addr %s146, 3
        %s150 = sadd.s32 %s148, %s149
        %s151 = smul.addr %s150, 8
        %s152 = scalar_lea.vmem %s1, %s151
        %s153 = smul.u32 3, %s17
      $region24: #{chamfer_loss.1} parent=15 // pred_fallthru
        _
    $region16: #{chamfer_loss.1} parent=5 // pred_fallthru
      _
    %p154 = scmp.le.s32.totalorder 1, %s8
    %p155 = scmp.lt.s32.totalorder %s8, 3
    %p156 = pnand %p154, %p155
    %p157 = pneg %p156
    // Predicated region
    $region25: #{chamfer_loss.1} parent=5 // pred_check
      _
    $region26: #{chamfer_loss.1} parent=5 // pred_check_branch
      %159 = sbr.rel (%p156) target = $region28
    $region27: #{chamfer_loss.1} parent=5 // pred_region
      %s160 = ssub.s32 %s8, 1
      %s161 = smul.u32 48, %s19
      %p162 = scmp.lt.s32.totalorder %s18, 1
      %s163 = scalar_select %p162, %s18, 1
      %p164 = scmp.lt.s32.totalorder %s161, 47
      %s165 = scalar_select %p164, %s161, 47
      %s166 = smul.addr %s163, 48
      %s167 = sadd.s32 %s165, %s166
      %s168 = smul.addr %s167, 8
      %s169 = scalar_lea.vmem %s0, %s168
      %p170 = pneg %p55
      %p171 = pneg %p52
      %s172 = smul.u32 3, %s20
      %p173 = scmp.lt.s32.totalorder %s18, 1
      %s174 = scalar_select %p173, %s18, 1
      %p175 = scmp.lt.s32.totalorder %s172, 2
      %s176 = scalar_select %p175, %s172, 2
      %s177 = smul.addr %s174, 3
      %s178 = sadd.s32 %s176, %s177
      %s179 = smul.addr %s178, 8
      %s180 = scalar_lea.vmem %s1, %s179
      %p181 = pneg %p83
      %p182 = pneg %p80
      %p183 = pneg %p109
      %p184 = pneg %p106
      %p185 = scmp.lt.s32.totalorder %s18, 1
      %s186 = scalar_select %p185, %s18, 1
      %s187 = scalar_lea.vmem %s2, %s186
      %s188 = smul.u32 48, %s19
      %p189 = scmp.lt.s32.totalorder %s18, 1
      %s190 = scalar_select %p189, %s18, 1
      %p191 = scmp.lt.s32.totalorder %s188, 47
      %s192 = scalar_select %p191, %s188, 47
      %s193 = smul.addr %s190, 48
      %s194 = sadd.s32 %s192, %s193
      %s195 = smul.addr %s194, 8
      %s196 = scalar_lea.vmem %s0, %s195
      %s197 = smul.u32 48, %s19
      %s198 = smul.u32 3, %s20
      %p199 = scmp.lt.s32.totalorder %s18, 1
      %s200 = scalar_select %p199, %s18, 1
      %p201 = scmp.lt.s32.totalorder %s198, 2
      %s202 = scalar_select %p201, %s198, 2
      %s203 = smul.addr %s200, 3
      %s204 = sadd.s32 %s202, %s203
      %s205 = smul.addr %s204, 8
      %s206 = scalar_lea.vmem %s1, %s205
      %s207 = smul.u32 3, %s20
      %p208 = scmp.lt.s32.totalorder %s18, 1
      %s209 = scalar_select %p208, %s18, 1
      %s210 = scalar_lea.vmem %s2, %s209
      %p211 = scmp.eq.s32.totalorder %s19, 0
      %p212 = scmp.eq.s32.totalorder %s20, 0
      %p213 = pnand %p211, %p212
      %p214 = pneg %p213
      // Predicated region
      $region29: #{chamfer_loss.1} parent=27 // pred_check
        _
      $region30: #{chamfer_loss.1} parent=27 // pred_check_branch
        %216 = sbr.rel (%p213) target = $region32
      $region31: #{chamfer_loss.1} parent=27 // pred_region
        %vm217 = vcmask 8192
        %218 = vst.msk [vmem:[%s210] sm:$0x1] %vm217, 0.0
      $region32: #{chamfer_loss.1} parent=27 // pred_fallthru
        _
      // Predicated region
      $region33: #{chamfer_loss.1} parent=27 // pred_check
        %p219 = pneg %p212
      $region34: #{chamfer_loss.1} parent=27 // pred_check_branch
        %221 = sbr.rel (%p219) target = $region36
      $region35: #{chamfer_loss.1} parent=27 // pred_region
        %vm222 = vcmask 7168
        %223 = vst.msk [vmem:[#allocation2] sm:$0xff] %vm222, inf
        %224 = vst.msk [vmem:[#allocation2 + $0x8] sm:$0xff] %vm222, inf
        %225 = vst.msk [vmem:[#allocation2 + $0x10] sm:$0xff] %vm222, inf
        %226 = vst.msk [vmem:[#allocation2 + $0x18] sm:$0xff] %vm222, inf
        %227 = vst.msk [vmem:[#allocation2 + $0x20] sm:$0xff] %vm222, inf
        %228 = vst.msk [vmem:[#allocation2 + $0x28] sm:$0xff] %vm222, inf
        %229 = vst.msk [vmem:[#allocation2 + $0x30] sm:$0xff] %vm222, inf
        %230 = vst.msk [vmem:[#allocation2 + $0x38] sm:$0xff] %vm222, inf
        %231 = vst.msk [vmem:[#allocation2 + $0x40] sm:$0xff] %vm222, inf
        %232 = vst.msk [vmem:[#allocation2 + $0x48] sm:$0xff] %vm222, inf
        %233 = vst.msk [vmem:[#allocation2 + $0x50] sm:$0xff] %vm222, inf
        %234 = vst.msk [vmem:[#allocation2 + $0x58] sm:$0xff] %vm222, inf
        %235 = vst.msk [vmem:[#allocation2 + $0x60] sm:$0xff] %vm222, inf
        %236 = vst.msk [vmem:[#allocation2 + $0x68] sm:$0xff] %vm222, inf
        %237 = vst.msk [vmem:[#allocation2 + $0x70] sm:$0xff] %vm222, inf
        %238 = vst.msk [vmem:[#allocation2 + $0x78] sm:$0xff] %vm222, inf
        %239 = vst.msk [vmem:[#allocation2 + $0x80] sm:$0xff] %vm222, inf
        %240 = vst.msk [vmem:[#allocation2 + $0x88] sm:$0xff] %vm222, inf
        %241 = vst.msk [vmem:[#allocation2 + $0x90] sm:$0xff] %vm222, inf
        %242 = vst.msk [vmem:[#allocation2 + $0x98] sm:$0xff] %vm222, inf
        %243 = vst.msk [vmem:[#allocation2 + $0xa0] sm:$0xff] %vm222, inf
        %244 = vst.msk [vmem:[#allocation2 + $0xa8] sm:$0xff] %vm222, inf
        %245 = vst.msk [vmem:[#allocation2 + $0xb0] sm:$0xff] %vm222, inf
        %246 = vst.msk [vmem:[#allocation2 + $0xb8] sm:$0xff] %vm222, inf
        %247 = vst.msk [vmem:[#allocation2 + $0xc0] sm:$0xff] %vm222, inf
        %248 = vst.msk [vmem:[#allocation2 + $0xc8] sm:$0xff] %vm222, inf
        %249 = vst.msk [vmem:[#allocation2 + $0xd0] sm:$0xff] %vm222, inf
        %250 = vst.msk [vmem:[#allocation2 + $0xd8] sm:$0xff] %vm222, inf
        %251 = vst.msk [vmem:[#allocation2 + $0xe0] sm:$0xff] %vm222, inf
        %252 = vst.msk [vmem:[#allocation2 + $0xe8] sm:$0xff] %vm222, inf
        %253 = vst.msk [vmem:[#allocation2 + $0xf0] sm:$0xff] %vm222, inf
        %254 = vst.msk [vmem:[#allocation2 + $0xf8] sm:$0xff] %vm222, inf
        %255 = vst.msk [vmem:[#allocation2 + $0x100] sm:$0xff] %vm222, inf
        %256 = vst.msk [vmem:[#allocation2 + $0x108] sm:$0xff] %vm222, inf
        %257 = vst.msk [vmem:[#allocation2 + $0x110] sm:$0xff] %vm222, inf
        %258 = vst.msk [vmem:[#allocation2 + $0x118] sm:$0xff] %vm222, inf
        %259 = vst.msk [vmem:[#allocation2 + $0x120] sm:$0xff] %vm222, inf
        %260 = vst.msk [vmem:[#allocation2 + $0x128] sm:$0xff] %vm222, inf
        %261 = vst.msk [vmem:[#allocation2 + $0x130] sm:$0xff] %vm222, inf
        %262 = vst.msk [vmem:[#allocation2 + $0x138] sm:$0xff] %vm222, inf
        %263 = vst.msk [vmem:[#allocation2 + $0x140] sm:$0xff] %vm222, inf
        %264 = vst.msk [vmem:[#allocation2 + $0x148] sm:$0xff] %vm222, inf
        %265 = vst.msk [vmem:[#allocation2 + $0x150] sm:$0xff] %vm222, inf
        %266 = vst.msk [vmem:[#allocation2 + $0x158] sm:$0xff] %vm222, inf
        %267 = vst.msk [vmem:[#allocation2 + $0x160] sm:$0xff] %vm222, inf
        %268 = vst.msk [vmem:[#allocation2 + $0x168] sm:$0xff] %vm222, inf
        %269 = vst.msk [vmem:[#allocation2 + $0x170] sm:$0xff] %vm222, inf
        %270 = vst.msk [vmem:[#allocation2 + $0x178] sm:$0xff] %vm222, inf
      $region36: #{chamfer_loss.1} parent=27 // pred_fallthru
        _
      %v271 = vld [vmem:[%s196] sm:$0xff]
      %v272 = vld [vmem:[%s196 + $0x8] sm:$0xff]
      %v273 = vld [vmem:[%s196 + $0x10] sm:$0xff]
      %v274 = vld [vmem:[%s196 + $0x18] sm:$0xff]
      %v275 = vld [vmem:[%s196 + $0x20] sm:$0xff]
      %v276 = vld [vmem:[%s196 + $0x28] sm:$0xff]
      %v277 = vld [vmem:[%s196 + $0x30] sm:$0xff]
      %v278 = vld [vmem:[%s196 + $0x38] sm:$0xff]
      %v279 = vld [vmem:[%s196 + $0x40] sm:$0xff]
      %v280 = vld [vmem:[%s196 + $0x48] sm:$0xff]
      %v281 = vld [vmem:[%s196 + $0x50] sm:$0xff]
      %v282 = vld [vmem:[%s196 + $0x58] sm:$0xff]
      %v283 = vld [vmem:[%s196 + $0x60] sm:$0xff]
      %v284 = vld [vmem:[%s196 + $0x68] sm:$0xff]
      %v285 = vld [vmem:[%s196 + $0x70] sm:$0xff]
      %v286 = vld [vmem:[%s196 + $0x78] sm:$0xff]
      %v287 = vld [vmem:[%s196 + $0x80] sm:$0xff]
      %v288 = vld [vmem:[%s196 + $0x88] sm:$0xff]
      %v289 = vld [vmem:[%s196 + $0x90] sm:$0xff]
      %v290 = vld [vmem:[%s196 + $0x98] sm:$0xff]
      %v291 = vld [vmem:[%s196 + $0xa0] sm:$0xff]
      %v292 = vld [vmem:[%s196 + $0xa8] sm:$0xff]
      %v293 = vld [vmem:[%s196 + $0xb0] sm:$0xff]
      %v294 = vld [vmem:[%s196 + $0xb8] sm:$0xff]
      %v295 = vld [vmem:[%s196 + $0xc0] sm:$0xff]
      %v296 = vld [vmem:[%s196 + $0xc8] sm:$0xff]
      %v297 = vld [vmem:[%s196 + $0xd0] sm:$0xff]
      %v298 = vld [vmem:[%s196 + $0xd8] sm:$0xff]
      %v299 = vld [vmem:[%s196 + $0xe0] sm:$0xff]
      %v300 = vld [vmem:[%s196 + $0xe8] sm:$0xff]
      %v301 = vld [vmem:[%s196 + $0xf0] sm:$0xff]
      %v302 = vld [vmem:[%s196 + $0xf8] sm:$0xff]
      %v303 = vld [vmem:[%s196 + $0x100] sm:$0xff]
      %v304 = vld [vmem:[%s196 + $0x108] sm:$0xff]
      %v305 = vld [vmem:[%s196 + $0x110] sm:$0xff]
      %v306 = vld [vmem:[%s196 + $0x118] sm:$0xff]
      %v307 = vld [vmem:[%s196 + $0x120] sm:$0xff]
      %v308 = vld [vmem:[%s196 + $0x128] sm:$0xff]
      %v309 = vld [vmem:[%s196 + $0x130] sm:$0xff]
      %v310 = vld [vmem:[%s196 + $0x138] sm:$0xff]
      %v311 = vld [vmem:[%s196 + $0x140] sm:$0xff]
      %v312 = vld [vmem:[%s196 + $0x148] sm:$0xff]
      %v313 = vld [vmem:[%s196 + $0x150] sm:$0xff]
      %v314 = vld [vmem:[%s196 + $0x158] sm:$0xff]
      %v315 = vld [vmem:[%s196 + $0x160] sm:$0xff]
      %v316 = vld [vmem:[%s196 + $0x168] sm:$0xff]
      %v317 = vld [vmem:[%s196 + $0x170] sm:$0xff]
      %v318 = vld [vmem:[%s196 + $0x178] sm:$0xff]
      %v319 = vld [vmem:[%s206] sm:$0x1f]
      %v320 = vld [vmem:[%s206 + $0x8] sm:$0x1f]
      %v321 = vld [vmem:[%s206 + $0x10] sm:$0x1f]
      %vm322 = vcmask 39936
      %v324 = vsel %vm322, %v271, 0
      %v327 = vsel %vm322, %v272, 0
      %v330 = vsel %vm322, %v273, 0
      %v333 = vsel %vm322, %v274, 0
      %v336 = vsel %vm322, %v275, 0
      %v339 = vsel %vm322, %v276, 0
      %v342 = vsel %vm322, %v277, 0
      %v345 = vsel %vm322, %v278, 0
      %v348 = vsel %vm322, %v279, 0
      %v351 = vsel %vm322, %v280, 0
      %v354 = vsel %vm322, %v281, 0
      %v357 = vsel %vm322, %v282, 0
      %v360 = vsel %vm322, %v283, 0
      %v363 = vsel %vm322, %v284, 0
      %v366 = vsel %vm322, %v285, 0
      %v369 = vsel %vm322, %v286, 0
      %v372 = vsel %vm322, %v287, 0
      %v375 = vsel %vm322, %v288, 0
      %v378 = vsel %vm322, %v289, 0
      %v381 = vsel %vm322, %v290, 0
      %v384 = vsel %vm322, %v291, 0
      %v387 = vsel %vm322, %v292, 0
      %v390 = vsel %vm322, %v293, 0
      %v393 = vsel %vm322, %v294, 0
      %v396 = vsel %vm322, %v295, 0
      %v399 = vsel %vm322, %v296, 0
      %v402 = vsel %vm322, %v297, 0
      %v405 = vsel %vm322, %v298, 0
      %v408 = vsel %vm322, %v299, 0
      %v411 = vsel %vm322, %v300, 0
      %v414 = vsel %vm322, %v301, 0
      %v417 = vsel %vm322, %v302, 0
      %v420 = vsel %vm322, %v303, 0
      %v423 = vsel %vm322, %v304, 0
      %v426 = vsel %vm322, %v305, 0
      %v429 = vsel %vm322, %v306, 0
      %v432 = vsel %vm322, %v307, 0
      %v435 = vsel %vm322, %v308, 0
      %v438 = vsel %vm322, %v309, 0
      %v441 = vsel %vm322, %v310, 0
      %v444 = vsel %vm322, %v311, 0
      %v447 = vsel %vm322, %v312, 0
      %v450 = vsel %vm322, %v313, 0
      %v453 = vsel %vm322, %v314, 0
      %v456 = vsel %vm322, %v315, 0
      %v459 = vsel %vm322, %v316, 0
      %v462 = vsel %vm322, %v317, 0
      %v465 = vsel %vm322, %v318, 0
      %vm467 = vcmask 1044480
      %v469 = vsel %vm467, %v319, 0
      %v472 = vsel %vm467, %v320, 0
      %v475 = vsel %vm467, %v321, 0
      %477 = vmatprep.subr.mxu0 %v472
      %478 = vmatpush1.msra.mxu0 %v469
      %479 = vmatprep.subr.mxu0 0.0
      %480 = vmatpush1.msra.mxu0 0.0
      %481 = vmatprep.subr.mxu0 0.0
      %482 = vmatpush1.msra.mxu0 0.0
      %483 = vmatprep.subr.mxu0 0.0
      %484 = vmatpush1.msra.mxu0 0.0
      %485 = vmatprep.subr.mxu0 0.0
      %486 = vmatpush1.msra.mxu0 0.0
      %487 = vmatprep.subr.mxu0 0.0
      %488 = vmatpush1.msra.mxu0 0.0
      %489 = vmatprep.subr.mxu0 0.0
      %490 = vmatpush1.msra.mxu0 0.0
      %491 = vmatprep.subr.mxu0 0.0
      %492 = vmatpush1.msra.mxu0 0.0
      %493 = vmatprep.subr.mxu0 0.0
      %494 = vmatpush1.msra.mxu0 0.0
      %495 = vmatprep.subr.mxu0 0.0
      %496 = vmatpush1.msra.mxu0 0.0
      %497 = vmatprep.subr.mxu0 0.0
      %498 = vmatpush1.msra.mxu0 0.0
      %499 = vmatprep.subr.mxu0 0.0
      %500 = vmatpush1.msra.mxu0 0.0
      %501 = vmatprep.subr.mxu0 0.0
      %502 = vmatpush1.msra.mxu0 0.0
      %503 = vmatprep.subr.mxu0 0.0
      %504 = vmatpush1.msra.mxu0 0.0
      %505 = vmatprep.subr.mxu0 0.0
      %506 = vmatpush1.msra.mxu0 0.0
      %507 = vmatprep.subr.mxu0 0.0
      %508 = vmatpush1.msra.mxu0 0.0
      %509 = vmatprep.subr.mxu0 0.0
      %510 = vmatpush1.msra.mxu0 0.0
      %511 = vmatprep.subr.mxu0 0.0
      %512 = vmatpush1.msra.mxu0 0.0
      %513 = vmatprep.subr.mxu0 0.0
      %514 = vmatpush1.msra.mxu0 0.0
      %515 = vmatprep.subr.mxu0 0.0
      %516 = vmatpush1.msra.mxu0 0.0
      %517 = vmatprep.subr.mxu0 0.0
      %518 = vmatpush1.msra.mxu0 0.0
      %519 = vmatprep.subr.mxu0 0.0
      %520 = vmatpush1.msra.mxu0 0.0
      %521 = vmatprep.subr.mxu0 0.0
      %522 = vmatpush1.msra.mxu0 0.0
      %523 = vmatprep.subr.mxu0 0.0
      %524 = vmatpush1.msra.mxu0 0.0
      %525 = vmatprep.subr.mxu0 0.0
      %526 = vmatpush1.msra.mxu0 0.0
      %527 = vmatprep.subr.mxu0 0.0
      %528 = vmatpush1.msra.mxu0 0.0
      %529 = vmatprep.subr.mxu0 0.0
      %530 = vmatpush1.msra.mxu0 0.0
      %531 = vmatprep.subr.mxu0 0.0
      %532 = vmatpush1.msra.mxu0 0.0
      %533 = vmatprep.subr.mxu0 0.0
      %534 = vmatpush1.msra.mxu0 0.0
      %535 = vmatprep.subr.mxu0 0.0
      %536 = vmatpush1.msra.mxu0 0.0
      %537 = vmatprep.subr.mxu0 0.0
      %538 = vmatpush1.msra.mxu0 0.0
      %539 = vmatprep.subr.mxu0 0.0
      %540 = vmatpush1.msra.mxu0 0.0
      %541 = vmatprep.mubr.f32.mxu0 0.0
      %542 = vmatmul.mubr.f32.gmra.mrb[0].mxu0 %v324
      %v543 = vpop.f32.mrb[0].mxu0
      %v544 = vadd.f32 0.0, %v543
      %v545 = vpop.f32.mrb[0].mxu0
      %v546 = vadd.f32 0.0, %v545
      %547 = vmatprep.mubr.f32.mxu0 0.0
      %548 = vmatmul.mubr.f32.gmra.mrb[0].mxu0 %v327
      %v549 = vpop.f32.mrb[0].mxu0
      %v550 = vadd.f32 0.0, %v549
      %v551 = vpop.f32.mrb[0].mxu0
      %v552 = vadd.f32 0.0, %v551
      %553 = vmatprep.mubr.f32.mxu0 0.0
      %554 = vmatmul.mubr.f32.gmra.mrb[0].mxu0 %v330
      %v555 = vpop.f32.mrb[0].mxu0
      %v556 = vadd.f32 0.0, %v555
      %v557 = vpop.f32.mrb[0].mxu0
      %v558 = vadd.f32 0.0, %v557
      %559 = vmatprep.mubr.f32.mxu0 0.0
      %560 = vmatmul.mubr.f32.gmra.mrb[0].mxu0 %v333
      %v561 = vpop.f32.mrb[0].mxu0
      %v562 = vadd.f32 0.0, %v561
      %v563 = vpop.f32.mrb[0].mxu0
      %v564 = vadd.f32 0.0, %v563
      %565 = vmatprep.mubr.f32.mxu0 0.0
      %566 = vmatmul.mubr.f32.gmra.mrb[0].mxu0 %v336
      %v567 = vpop.f32.mrb[0].mxu0
      %v568 = vadd.f32 0.0, %v567
      %v569 = vpop.f32.mrb[0].mxu0
      %v570 = vadd.f32 0.0, %v569
      %571 = vmatprep.mubr.f32.mxu0 0.0
      %572 = vmatmul.mubr.f32.gmra.mrb[0].mxu0 %v339
      %v573 = vpop.f32.mrb[0].mxu0
      %v574 = vadd.f32 0.0, %v573
      %v575 = vpop.f32.mrb[0].mxu0
      %v576 = vadd.f32 0.0, %v575
      %577 = vmatprep.mubr.f32.mxu0 0.0
      %578 = vmatmul.mubr.f32.gmra.mrb[0].mxu0 %v342
      %v579 = vpop.f32.mrb[0].mxu0
      %v580 = vadd.f32 0.0, %v579
      %v581 = vpop.f32.mrb[0].mxu0
      %v582 = vadd.f32 0.0, %v581
      %583 = vmatprep.mubr.f32.mxu0 0.0
      %584 = vmatmul.mubr.f32.gmra.mrb[0].mxu0 %v345
      %v585 = vpop.f32.mrb[0].mxu0
      %v586 = vadd.f32 0.0, %v585
      %v587 = vpop.f32.mrb[0].mxu0
      %v588 = vadd.f32 0.0, %v587
      %589 = vmatprep.mubr.f32.mxu0 0.0
      %590 = vmatmul.mubr.f32.gmra.mrb[0].mxu0 %v348
      %v591 = vpop.f32.mrb[0].mxu0
      %v592 = vadd.f32 0.0, %v591
      %v593 = vpop.f32.mrb[0].mxu0
      %v594 = vadd.f32 0.0, %v593
      %595 = vmatprep.mubr.f32.mxu0 0.0
      %596 = vmatmul.mubr.f32.gmra.mrb[0].mxu0 %v351
      %v597 = vpop.f32.mrb[0].mxu0
      %v598 = vadd.f32 0.0, %v597
      %v599 = vpop.f32.mrb[0].mxu0
      %v600 = vadd.f32 0.0, %v599
      %601 = vmatprep.mubr.f32.mxu0 0.0
      %602 = vmatmul.mubr.f32.gmra.mrb[0].mxu0 %v354
      %v603 = vpop.f32.mrb[0].mxu0
      %v604 = vadd.f32 0.0, %v603
      %v605 = vpop.f32.mrb[0].mxu0
      %v606 = vadd.f32 0.0, %v605
      %607 = vmatprep.mubr.f32.mxu0 0.0
      %608 = vmatmul.mubr.f32.gmra.mrb[0].mxu0 %v357
      %v609 = vpop.f32.mrb[0].mxu0
      %v610 = vadd.f32 0.0, %v609
      %v611 = vpop.f32.mrb[0].mxu0
      %v612 = vadd.f32 0.0, %v611
      %613 = vmatprep.mubr.f32.mxu0 0.0
      %614 = vmatmul.mubr.f32.gmra.mrb[0].mxu0 %v360
      %v615 = vpop.f32.mrb[0].mxu0
      %v616 = vadd.f32 0.0, %v615
      %v617 = vpop.f32.mrb[0].mxu0
      %v618 = vadd.f32 0.0, %v617
      %619 = vmatprep.mubr.f32.mxu0 0.0
      %620 = vmatmul.mubr.f32.gmra.mrb[0].mxu0 %v363
      %v621 = vpop.f32.mrb[0].mxu0
      %v622 = vadd.f32 0.0, %v621
      %v623 = vpop.f32.mrb[0].mxu0
      %v624 = vadd.f32 0.0, %v623
      %625 = vmatprep.mubr.f32.mxu0 0.0
      %626 = vmatmul.mubr.f32.gmra.mrb[0].mxu0 %v366
      %v627 = vpop.f32.mrb[0].mxu0
      %v628 = vadd.f32 0.0, %v627
      %v629 = vpop.f32.mrb[0].mxu0
      %v630 = vadd.f32 0.0, %v629
      %631 = vmatprep.mubr.f32.mxu0 0.0
      %632 = vmatmul.mubr.f32.gmra.mrb[0].mxu0 %v369
      %v633 = vpop.f32.mrb[0].mxu0
      %v634 = vadd.f32 0.0, %v633
      %v635 = vpop.f32.mrb[0].mxu0
      %v636 = vadd.f32 0.0, %v635
      %637 = vmatprep.mubr.f32.mxu0 0.0
      %638 = vmatmul.mubr.f32.gmra.mrb[0].mxu0 %v372
      %v639 = vpop.f32.mrb[0].mxu0
      %v640 = vadd.f32 0.0, %v639
      %v641 = vpop.f32.mrb[0].mxu0
      %v642 = vadd.f32 0.0, %v641
      %643 = vmatprep.mubr.f32.mxu0 0.0
      %644 = vmatmul.mubr.f32.gmra.mrb[0].mxu0 %v375
      %v645 = vpop.f32.mrb[0].mxu0
      %v646 = vadd.f32 0.0, %v645
      %v647 = vpop.f32.mrb[0].mxu0
      %v648 = vadd.f32 0.0, %v647
      %649 = vmatprep.mubr.f32.mxu0 0.0
      %650 = vmatmul.mubr.f32.gmra.mrb[0].mxu0 %v378
      %v651 = vpop.f32.mrb[0].mxu0
      %v652 = vadd.f32 0.0, %v651
      %v653 = vpop.f32.mrb[0].mxu0
      %v654 = vadd.f32 0.0, %v653
      %655 = vmatprep.mubr.f32.mxu0 0.0
      %656 = vmatmul.mubr.f32.gmra.mrb[0].mxu0 %v381
      %v657 = vpop.f32.mrb[0].mxu0
      %v658 = vadd.f32 0.0, %v657
      %v659 = vpop.f32.mrb[0].mxu0
      %v660 = vadd.f32 0.0, %v659
      %661 = vmatprep.mubr.f32.mxu0 0.0
      %662 = vmatmul.mubr.f32.gmra.mrb[0].mxu0 %v384
      %v663 = vpop.f32.mrb[0].mxu0
      %v664 = vadd.f32 0.0, %v663
      %v665 = vpop.f32.mrb[0].mxu0
      %v666 = vadd.f32 0.0, %v665
      %667 = vmatprep.mubr.f32.mxu0 0.0
      %668 = vmatmul.mubr.f32.gmra.mrb[0].mxu0 %v387
      %v669 = vpop.f32.mrb[0].mxu0
      %v670 = vadd.f32 0.0, %v669
      %v671 = vpop.f32.mrb[0].mxu0
      %v672 = vadd.f32 0.0, %v671
      %673 = vmatprep.mubr.f32.mxu0 0.0
      %674 = vmatmul.mubr.f32.gmra.mrb[0].mxu0 %v390
      %v675 = vpop.f32.mrb[0].mxu0
      %v676 = vadd.f32 0.0, %v675
      %v677 = vpop.f32.mrb[0].mxu0
      %v678 = vadd.f32 0.0, %v677
      %679 = vmatprep.mubr.f32.mxu0 0.0
      %680 = vmatmul.mubr.f32.gmra.mrb[0].mxu0 %v393
      %v681 = vpop.f32.mrb[0].mxu0
      %v682 = vadd.f32 0.0, %v681
      %v683 = vpop.f32.mrb[0].mxu0
      %v684 = vadd.f32 0.0, %v683
      %685 = vmatprep.mubr.f32.mxu0 0.0
      %686 = vmatmul.mubr.f32.gmra.mrb[0].mxu0 %v396
      %v687 = vpop.f32.mrb[0].mxu0
      %v688 = vadd.f32 0.0, %v687
      %v689 = vpop.f32.mrb[0].mxu0
      %v690 = vadd.f32 0.0, %v689
      %691 = vmatprep.mubr.f32.mxu0 0.0
      %692 = vmatmul.mubr.f32.gmra.mrb[0].mxu0 %v399
      %v693 = vpop.f32.mrb[0].mxu0
      %v694 = vadd.f32 0.0, %v693
      %v695 = vpop.f32.mrb[0].mxu0
      %v696 = vadd.f32 0.0, %v695
      %697 = vmatprep.mubr.f32.mxu0 0.0
      %698 = vmatmul.mubr.f32.gmra.mrb[0].mxu0 %v402
      %v699 = vpop.f32.mrb[0].mxu0
      %v700 = vadd.f32 0.0, %v699
      %v701 = vpop.f32.mrb[0].mxu0
      %v702 = vadd.f32 0.0, %v701
      %703 = vmatprep.mubr.f32.mxu0 0.0
      %704 = vmatmul.mubr.f32.gmra.mrb[0].mxu0 %v405
      %v705 = vpop.f32.mrb[0].mxu0
      %v706 = vadd.f32 0.0, %v705
      %v707 = vpop.f32.mrb[0].mxu0
      %v708 = vadd.f32 0.0, %v707
      %709 = vmatprep.mubr.f32.mxu0 0.0
      %710 = vmatmul.mubr.f32.gmra.mrb[0].mxu0 %v408
      %v711 = vpop.f32.mrb[0].mxu0
      %v712 = vadd.f32 0.0, %v711
      %v713 = vpop.f32.mrb[0].mxu0
      %v714 = vadd.f32 0.0, %v713
      %715 = vmatprep.mubr.f32.mxu0 0.0
      %716 = vmatmul.mubr.f32.gmra.mrb[0].mxu0 %v411
      %v717 = vpop.f32.mrb[0].mxu0
      %v718 = vadd.f32 0.0, %v717
      %v719 = vpop.f32.mrb[0].mxu0
      %v720 = vadd.f32 0.0, %v719
      %721 = vmatprep.mubr.f32.mxu0 0.0
      %722 = vmatmul.mubr.f32.gmra.mrb[0].mxu0 %v414
      %v723 = vpop.f32.mrb[0].mxu0
      %v724 = vadd.f32 0.0, %v723
      %v725 = vpop.f32.mrb[0].mxu0
      %v726 = vadd.f32 0.0, %v725
      %727 = vmatprep.mubr.f32.mxu0 0.0
      %728 = vmatmul.mubr.f32.gmra.mrb[0].mxu0 %v417
      %v729 = vpop.f32.mrb[0].mxu0
      %v730 = vadd.f32 0.0, %v729
      %v731 = vpop.f32.mrb[0].mxu0
      %v732 = vadd.f32 0.0, %v731
      %733 = vmatprep.mubr.f32.mxu0 0.0
      %734 = vmatmul.mubr.f32.gmra.mrb[0].mxu0 %v420
      %v735 = vpop.f32.mrb[0].mxu0
      %v736 = vadd.f32 0.0, %v735
      %v737 = vpop.f32.mrb[0].mxu0
      %v738 = vadd.f32 0.0, %v737
      %739 = vmatprep.mubr.f32.mxu0 0.0
      %740 = vmatmul.mubr.f32.gmra.mrb[0].mxu0 %v423
      %v741 = vpop.f32.mrb[0].mxu0
      %v742 = vadd.f32 0.0, %v741
      %v743 = vpop.f32.mrb[0].mxu0
      %v744 = vadd.f32 0.0, %v743
      %745 = vmatprep.mubr.f32.mxu0 0.0
      %746 = vmatmul.mubr.f32.gmra.mrb[0].mxu0 %v426
      %v747 = vpop.f32.mrb[0].mxu0
      %v748 = vadd.f32 0.0, %v747
      %v749 = vpop.f32.mrb[0].mxu0
      %v750 = vadd.f32 0.0, %v749
      %751 = vmatprep.mubr.f32.mxu0 0.0
      %752 = vmatmul.mubr.f32.gmra.mrb[0].mxu0 %v429
      %v753 = vpop.f32.mrb[0].mxu0
      %v754 = vadd.f32 0.0, %v753
      %v755 = vpop.f32.mrb[0].mxu0
      %v756 = vadd.f32 0.0, %v755
      %757 = vmatprep.mubr.f32.mxu0 0.0
      %758 = vmatmul.mubr.f32.gmra.mrb[0].mxu0 %v432
      %v759 = vpop.f32.mrb[0].mxu0
      %v760 = vadd.f32 0.0, %v759
      %v761 = vpop.f32.mrb[0].mxu0
      %v762 = vadd.f32 0.0, %v761
      %763 = vmatprep.mubr.f32.mxu0 0.0
      %764 = vmatmul.mubr.f32.gmra.mrb[0].mxu0 %v435
      %v765 = vpop.f32.mrb[0].mxu0
      %v766 = vadd.f32 0.0, %v765
      %v767 = vpop.f32.mrb[0].mxu0
      %v768 = vadd.f32 0.0, %v767
      %769 = vmatprep.mubr.f32.mxu0 0.0
      %770 = vmatmul.mubr.f32.gmra.mrb[0].mxu0 %v438
      %v771 = vpop.f32.mrb[0].mxu0
      %v772 = vadd.f32 0.0, %v771
      %v773 = vpop.f32.mrb[0].mxu0
      %v774 = vadd.f32 0.0, %v773
      %775 = vmatprep.mubr.f32.mxu0 0.0
      %776 = vmatmul.mubr.f32.gmra.mrb[0].mxu0 %v441
      %v777 = vpop.f32.mrb[0].mxu0
      %v778 = vadd.f32 0.0, %v777
      %v779 = vpop.f32.mrb[0].mxu0
      %v780 = vadd.f32 0.0, %v779
      %781 = vmatprep.mubr.f32.mxu0 0.0
      %782 = vmatmul.mubr.f32.gmra.mrb[0].mxu0 %v444
      %v783 = vpop.f32.mrb[0].mxu0
      %v784 = vadd.f32 0.0, %v783
      %v785 = vpop.f32.mrb[0].mxu0
      %v786 = vadd.f32 0.0, %v785
      %787 = vmatprep.mubr.f32.mxu0 0.0
      %788 = vmatmul.mubr.f32.gmra.mrb[0].mxu0 %v447
      %v789 = vpop.f32.mrb[0].mxu0
      %v790 = vadd.f32 0.0, %v789
      %v791 = vpop.f32.mrb[0].mxu0
      %v792 = vadd.f32 0.0, %v791
      %793 = vmatprep.mubr.f32.mxu0 0.0
      %794 = vmatmul.mubr.f32.gmra.mrb[0].mxu0 %v450
      %v795 = vpop.f32.mrb[0].mxu0
      %v796 = vadd.f32 0.0, %v795
      %v797 = vpop.f32.mrb[0].mxu0
      %v798 = vadd.f32 0.0, %v797
      %799 = vmatprep.mubr.f32.mxu0 0.0
      %800 = vmatmul.mubr.f32.gmra.mrb[0].mxu0 %v453
      %v801 = vpop.f32.mrb[0].mxu0
      %v802 = vadd.f32 0.0, %v801
      %v803 = vpop.f32.mrb[0].mxu0
      %v804 = vadd.f32 0.0, %v803
      %805 = vmatprep.mubr.f32.mxu0 0.0
      %806 = vmatmul.mubr.f32.gmra.mrb[0].mxu0 %v456
      %v807 = vpop.f32.mrb[0].mxu0
      %v808 = vadd.f32 0.0, %v807
      %v809 = vpop.f32.mrb[0].mxu0
      %v810 = vadd.f32 0.0, %v809
      %811 = vmatprep.mubr.f32.mxu0 0.0
      %812 = vmatmul.mubr.f32.gmra.mrb[0].mxu0 %v459
      %v813 = vpop.f32.mrb[0].mxu0
      %v814 = vadd.f32 0.0, %v813
      %v815 = vpop.f32.mrb[0].mxu0
      %v816 = vadd.f32 0.0, %v815
      %817 = vmatprep.mubr.f32.mxu0 0.0
      %818 = vmatmul.mubr.f32.gmra.mrb[0].mxu0 %v462
      %v819 = vpop.f32.mrb[0].mxu0
      %v820 = vadd.f32 0.0, %v819
      %v821 = vpop.f32.mrb[0].mxu0
      %v822 = vadd.f32 0.0, %v821
      %823 = vmatprep.mubr.f32.mxu0 0.0
      %824 = vmatmul.mubr.f32.gmra.mrb[0].mxu0 %v465
      %v825 = vpop.f32.mrb[0].mxu0
      %v826 = vadd.f32 0.0, %v825
      %v827 = vpop.f32.mrb[0].mxu0
      %v828 = vadd.f32 0.0, %v827
      %829 = vdwg.mxu0
      %830 = vmatprep.subr.mxu0 0.0
      %831 = vmatpush1.msra.mxu0 %v475
      %832 = vmatprep.subr.mxu0 0.0
      %833 = vmatpush1.msra.mxu0 0.0
      %834 = vmatprep.subr.mxu0 0.0
      %835 = vmatpush1.msra.mxu0 0.0
      %836 = vmatprep.subr.mxu0 0.0
      %837 = vmatpush1.msra.mxu0 0.0
      %838 = vmatprep.subr.mxu0 0.0
      %839 = vmatpush1.msra.mxu0 0.0
      %840 = vmatprep.subr.mxu0 0.0
      %841 = vmatpush1.msra.mxu0 0.0
      %842 = vmatprep.subr.mxu0 0.0
      %843 = vmatpush1.msra.mxu0 0.0
      %844 = vmatprep.subr.mxu0 0.0
      %845 = vmatpush1.msra.mxu0 0.0
      %846 = vmatprep.subr.mxu0 0.0
      %847 = vmatpush1.msra.mxu0 0.0
      %848 = vmatprep.subr.mxu0 0.0
      %849 = vmatpush1.msra.mxu0 0.0
      %850 = vmatprep.subr.mxu0 0.0
      %851 = vmatpush1.msra.mxu0 0.0
      %852 = vmatprep.subr.mxu0 0.0
      %853 = vmatpush1.msra.mxu0 0.0
      %854 = vmatprep.subr.mxu0 0.0
      %855 = vmatpush1.msra.mxu0 0.0
      %856 = vmatprep.subr.mxu0 0.0
      %857 = vmatpush1.msra.mxu0 0.0
      %858 = vmatprep.subr.mxu0 0.0
      %859 = vmatpush1.msra.mxu0 0.0
      %860 = vmatprep.subr.mxu0 0.0
      %861 = vmatpush1.msra.mxu0 0.0
      %862 = vmatprep.subr.mxu0 0.0
      %863 = vmatpush1.msra.mxu0 0.0
      %864 = vmatprep.subr.mxu0 0.0
      %865 = vmatpush1.msra.mxu0 0.0
      %866 = vmatprep.subr.mxu0 0.0
      %867 = vmatpush1.msra.mxu0 0.0
      %868 = vmatprep.subr.mxu0 0.0
      %869 = vmatpush1.msra.mxu0 0.0
      %870 = vmatprep.subr.mxu0 0.0
      %871 = vmatpush1.msra.mxu0 0.0
      %872 = vmatprep.subr.mxu0 0.0
      %873 = vmatpush1.msra.mxu0 0.0
      %874 = vmatprep.subr.mxu0 0.0
      %875 = vmatpush1.msra.mxu0 0.0
      %876 = vmatprep.subr.mxu0 0.0
      %877 = vmatpush1.msra.mxu0 0.0
      %878 = vmatprep.subr.mxu0 0.0
      %879 = vmatpush1.msra.mxu0 0.0
      %880 = vmatprep.subr.mxu0 0.0
      %881 = vmatpush1.msra.mxu0 0.0
      %882 = vmatprep.subr.mxu0 0.0
      %883 = vmatpush1.msra.mxu0 0.0
      %884 = vmatprep.subr.mxu0 0.0
      %885 = vmatpush1.msra.mxu0 0.0
      %886 = vmatprep.subr.mxu0 0.0
      %887 = vmatpush1.msra.mxu0 0.0
      %888 = vmatprep.subr.mxu0 0.0
      %889 = vmatpush1.msra.mxu0 0.0
      %890 = vmatprep.subr.mxu0 0.0
      %891 = vmatpush1.msra.mxu0 0.0
      %892 = vmatprep.subr.mxu0 0.0
      %893 = vmatpush1.msra.mxu0 0.0
      %894 = vmatprep.mubr.f32.mxu0 0.0
      %895 = vmatmul.mubr.f32.gmra.mrb[0].mxu0 %v324
      %v896 = vpop.f32.mrb[0].mxu0
      %v897 = vadd.f32 0.0, %v896
      %v898 = vpop.f32.mrb[0].mxu0
      %899 = vmatprep.mubr.f32.mxu0 0.0
      %900 = vmatmul.mubr.f32.gmra.mrb[0].mxu0 %v327
      %v901 = vpop.f32.mrb[0].mxu0
      %v902 = vadd.f32 0.0, %v901
      %v903 = vpop.f32.mrb[0].mxu0
      %904 = vmatprep.mubr.f32.mxu0 0.0
      %905 = vmatmul.mubr.f32.gmra.mrb[0].mxu0 %v330
      %v906 = vpop.f32.mrb[0].mxu0
      %v907 = vadd.f32 0.0, %v906
      %v908 = vpop.f32.mrb[0].mxu0
      %909 = vmatprep.mubr.f32.mxu0 0.0
      %910 = vmatmul.mubr.f32.gmra.mrb[0].mxu0 %v333
      %v911 = vpop.f32.mrb[0].mxu0
      %v912 = vadd.f32 0.0, %v911
      %v913 = vpop.f32.mrb[0].mxu0
      %914 = vmatprep.mubr.f32.mxu0 0.0
      %915 = vmatmul.mubr.f32.gmra.mrb[0].mxu0 %v336
      %v916 = vpop.f32.mrb[0].mxu0
      %v917 = vadd.f32 0.0, %v916
      %v918 = vpop.f32.mrb[0].mxu0
      %919 = vmatprep.mubr.f32.mxu0 0.0
      %920 = vmatmul.mubr.f32.gmra.mrb[0].mxu0 %v339
      %v921 = vpop.f32.mrb[0].mxu0
      %v922 = vadd.f32 0.0, %v921
      %v923 = vpop.f32.mrb[0].mxu0
      %924 = vmatprep.mubr.f32.mxu0 0.0
      %925 = vmatmul.mubr.f32.gmra.mrb[0].mxu0 %v342
      %v926 = vpop.f32.mrb[0].mxu0
      %v927 = vadd.f32 0.0, %v926
      %v928 = vpop.f32.mrb[0].mxu0
      %929 = vmatprep.mubr.f32.mxu0 0.0
      %930 = vmatmul.mubr.f32.gmra.mrb[0].mxu0 %v345
      %v931 = vpop.f32.mrb[0].mxu0
      %v932 = vadd.f32 0.0, %v931
      %v933 = vpop.f32.mrb[0].mxu0
      %934 = vmatprep.mubr.f32.mxu0 0.0
      %935 = vmatmul.mubr.f32.gmra.mrb[0].mxu0 %v348
      %v936 = vpop.f32.mrb[0].mxu0
      %v937 = vadd.f32 0.0, %v936
      %v938 = vpop.f32.mrb[0].mxu0
      %939 = vmatprep.mubr.f32.mxu0 0.0
      %940 = vmatmul.mubr.f32.gmra.mrb[0].mxu0 %v351
      %v941 = vpop.f32.mrb[0].mxu0
      %v942 = vadd.f32 0.0, %v941
      %v943 = vpop.f32.mrb[0].mxu0
      %944 = vmatprep.mubr.f32.mxu0 0.0
      %945 = vmatmul.mubr.f32.gmra.mrb[0].mxu0 %v354
      %v946 = vpop.f32.mrb[0].mxu0
      %v947 = vadd.f32 0.0, %v946
      %v948 = vpop.f32.mrb[0].mxu0
      %949 = vmatprep.mubr.f32.mxu0 0.0
      %950 = vmatmul.mubr.f32.gmra.mrb[0].mxu0 %v357
      %v951 = vpop.f32.mrb[0].mxu0
      %v952 = vadd.f32 0.0, %v951
      %v953 = vpop.f32.mrb[0].mxu0
      %954 = vmatprep.mubr.f32.mxu0 0.0
      %955 = vmatmul.mubr.f32.gmra.mrb[0].mxu0 %v360
      %v956 = vpop.f32.mrb[0].mxu0
      %v957 = vadd.f32 0.0, %v956
      %v958 = vpop.f32.mrb[0].mxu0
      %959 = vmatprep.mubr.f32.mxu0 0.0
      %960 = vmatmul.mubr.f32.gmra.mrb[0].mxu0 %v363
      %v961 = vpop.f32.mrb[0].mxu0
      %v962 = vadd.f32 0.0, %v961
      %v963 = vpop.f32.mrb[0].mxu0
      %964 = vmatprep.mubr.f32.mxu0 0.0
      %965 = vmatmul.mubr.f32.gmra.mrb[0].mxu0 %v366
      %v966 = vpop.f32.mrb[0].mxu0
      %v967 = vadd.f32 0.0, %v966
      %v968 = vpop.f32.mrb[0].mxu0
      %969 = vmatprep.mubr.f32.mxu0 0.0
      %970 = vmatmul.mubr.f32.gmra.mrb[0].mxu0 %v369
      %v971 = vpop.f32.mrb[0].mxu0
      %v972 = vadd.f32 0.0, %v971
      %v973 = vpop.f32.mrb[0].mxu0
      %974 = vmatprep.mubr.f32.mxu0 0.0
      %975 = vmatmul.mubr.f32.gmra.mrb[0].mxu0 %v372
      %v976 = vpop.f32.mrb[0].mxu0
      %v977 = vadd.f32 0.0, %v976
      %v978 = vpop.f32.mrb[0].mxu0
      %979 = vmatprep.mubr.f32.mxu0 0.0
      %980 = vmatmul.mubr.f32.gmra.mrb[0].mxu0 %v375
      %v981 = vpop.f32.mrb[0].mxu0
      %v982 = vadd.f32 0.0, %v981
      %v983 = vpop.f32.mrb[0].mxu0
      %984 = vmatprep.mubr.f32.mxu0 0.0
      %985 = vmatmul.mubr.f32.gmra.mrb[0].mxu0 %v378
      %v986 = vpop.f32.mrb[0].mxu0
      %v987 = vadd.f32 0.0, %v986
      %v988 = vpop.f32.mrb[0].mxu0
      %989 = vmatprep.mubr.f32.mxu0 0.0
      %990 = vmatmul.mubr.f32.gmra.mrb[0].mxu0 %v381
      %v991 = vpop.f32.mrb[0].mxu0
      %v992 = vadd.f32 0.0, %v991
      %v993 = vpop.f32.mrb[0].mxu0
      %994 = vmatprep.mubr.f32.mxu0 0.0
      %995 = vmatmul.mubr.f32.gmra.mrb[0].mxu0 %v384
      %v996 = vpop.f32.mrb[0].mxu0
      %v997 = vadd.f32 0.0, %v996
      %v998 = vpop.f32.mrb[0].mxu0
      %999 = vmatprep.mubr.f32.mxu0 0.0
      %1000 = vmatmul.mubr.f32.gmra.mrb[0].mxu0 %v387
      %v1001 = vpop.f32.mrb[0].mxu0
      %v1002 = vadd.f32 0.0, %v1001
      %v1003 = vpop.f32.mrb[0].mxu0
      %1004 = vmatprep.mubr.f32.mxu0 0.0
      %1005 = vmatmul.mubr.f32.gmra.mrb[0].mxu0 %v390
      %v1006 = vpop.f32.mrb[0].mxu0
      %v1007 = vadd.f32 0.0, %v1006
      %v1008 = vpop.f32.mrb[0].mxu0
      %1009 = vmatprep.mubr.f32.mxu0 0.0
      %1010 = vmatmul.mubr.f32.gmra.mrb[0].mxu0 %v393
      %v1011 = vpop.f32.mrb[0].mxu0
      %v1012 = vadd.f32 0.0, %v1011
      %v1013 = vpop.f32.mrb[0].mxu0
      %1014 = vmatprep.mubr.f32.mxu0 0.0
      %1015 = vmatmul.mubr.f32.gmra.mrb[0].mxu0 %v396
      %v1016 = vpop.f32.mrb[0].mxu0
      %v1017 = vadd.f32 0.0, %v1016
      %v1018 = vpop.f32.mrb[0].mxu0
      %1019 = vmatprep.mubr.f32.mxu0 0.0
      %1020 = vmatmul.mubr.f32.gmra.mrb[0].mxu0 %v399
      %v1021 = vpop.f32.mrb[0].mxu0
      %v1022 = vadd.f32 0.0, %v1021
      %v1023 = vpop.f32.mrb[0].mxu0
      %1024 = vmatprep.mubr.f32.mxu0 0.0
      %1025 = vmatmul.mubr.f32.gmra.mrb[0].mxu0 %v402
      %v1026 = vpop.f32.mrb[0].mxu0
      %v1027 = vadd.f32 0.0, %v1026
      %v1028 = vpop.f32.mrb[0].mxu0
      %1029 = vmatprep.mubr.f32.mxu0 0.0
      %1030 = vmatmul.mubr.f32.gmra.mrb[0].mxu0 %v405
      %v1031 = vpop.f32.mrb[0].mxu0
      %v1032 = vadd.f32 0.0, %v1031
      %v1033 = vpop.f32.mrb[0].mxu0
      %1034 = vmatprep.mubr.f32.mxu0 0.0
      %1035 = vmatmul.mubr.f32.gmra.mrb[0].mxu0 %v408
      %v1036 = vpop.f32.mrb[0].mxu0
      %v1037 = vadd.f32 0.0, %v1036
      %v1038 = vpop.f32.mrb[0].mxu0
      %1039 = vmatprep.mubr.f32.mxu0 0.0
      %1040 = vmatmul.mubr.f32.gmra.mrb[0].mxu0 %v411
      %v1041 = vpop.f32.mrb[0].mxu0
      %v1042 = vadd.f32 0.0, %v1041
      %v1043 = vpop.f32.mrb[0].mxu0
      %1044 = vmatprep.mubr.f32.mxu0 0.0
      %1045 = vmatmul.mubr.f32.gmra.mrb[0].mxu0 %v414
      %v1046 = vpop.f32.mrb[0].mxu0
      %v1047 = vadd.f32 0.0, %v1046
      %v1048 = vpop.f32.mrb[0].mxu0
      %1049 = vmatprep.mubr.f32.mxu0 0.0
      %1050 = vmatmul.mubr.f32.gmra.mrb[0].mxu0 %v417
      %v1051 = vpop.f32.mrb[0].mxu0
      %v1052 = vadd.f32 0.0, %v1051
      %v1053 = vpop.f32.mrb[0].mxu0
      %1054 = vmatprep.mubr.f32.mxu0 0.0
      %1055 = vmatmul.mubr.f32.gmra.mrb[0].mxu0 %v420
      %v1056 = vpop.f32.mrb[0].mxu0
      %v1057 = vadd.f32 0.0, %v1056
      %v1058 = vpop.f32.mrb[0].mxu0
      %1059 = vmatprep.mubr.f32.mxu0 0.0
      %1060 = vmatmul.mubr.f32.gmra.mrb[0].mxu0 %v423
      %v1061 = vpop.f32.mrb[0].mxu0
      %v1062 = vadd.f32 0.0, %v1061
      %v1063 = vpop.f32.mrb[0].mxu0
      %1064 = vmatprep.mubr.f32.mxu0 0.0
      %1065 = vmatmul.mubr.f32.gmra.mrb[0].mxu0 %v426
      %v1066 = vpop.f32.mrb[0].mxu0
      %v1067 = vadd.f32 0.0, %v1066
      %v1068 = vpop.f32.mrb[0].mxu0
      %1069 = vmatprep.mubr.f32.mxu0 0.0
      %1070 = vmatmul.mubr.f32.gmra.mrb[0].mxu0 %v429
      %v1071 = vpop.f32.mrb[0].mxu0
      %v1072 = vadd.f32 0.0, %v1071
      %v1073 = vpop.f32.mrb[0].mxu0
      %1074 = vmatprep.mubr.f32.mxu0 0.0
      %1075 = vmatmul.mubr.f32.gmra.mrb[0].mxu0 %v432
      %v1076 = vpop.f32.mrb[0].mxu0
      %v1077 = vadd.f32 0.0, %v1076
      %v1078 = vpop.f32.mrb[0].mxu0
      %1079 = vmatprep.mubr.f32.mxu0 0.0
      %1080 = vmatmul.mubr.f32.gmra.mrb[0].mxu0 %v435
      %v1081 = vpop.f32.mrb[0].mxu0
      %v1082 = vadd.f32 0.0, %v1081
      %v1083 = vpop.f32.mrb[0].mxu0
      %1084 = vmatprep.mubr.f32.mxu0 0.0
      %1085 = vmatmul.mubr.f32.gmra.mrb[0].mxu0 %v438
      %v1086 = vpop.f32.mrb[0].mxu0
      %v1087 = vadd.f32 0.0, %v1086
      %v1088 = vpop.f32.mrb[0].mxu0
      %1089 = vmatprep.mubr.f32.mxu0 0.0
      %1090 = vmatmul.mubr.f32.gmra.mrb[0].mxu0 %v441
      %v1091 = vpop.f32.mrb[0].mxu0
      %v1092 = vadd.f32 0.0, %v1091
      %v1093 = vpop.f32.mrb[0].mxu0
      %1094 = vmatprep.mubr.f32.mxu0 0.0
      %1095 = vmatmul.mubr.f32.gmra.mrb[0].mxu0 %v444
      %v1096 = vpop.f32.mrb[0].mxu0
      %v1097 = vadd.f32 0.0, %v1096
      %v1098 = vpop.f32.mrb[0].mxu0
      %1099 = vmatprep.mubr.f32.mxu0 0.0
      %1100 = vmatmul.mubr.f32.gmra.mrb[0].mxu0 %v447
      %v1101 = vpop.f32.mrb[0].mxu0
      %v1102 = vadd.f32 0.0, %v1101
      %v1103 = vpop.f32.mrb[0].mxu0
      %1104 = vmatprep.mubr.f32.mxu0 0.0
      %1105 = vmatmul.mubr.f32.gmra.mrb[0].mxu0 %v450
      %v1106 = vpop.f32.mrb[0].mxu0
      %v1107 = vadd.f32 0.0, %v1106
      %v1108 = vpop.f32.mrb[0].mxu0
      %1109 = vmatprep.mubr.f32.mxu0 0.0
      %1110 = vmatmul.mubr.f32.gmra.mrb[0].mxu0 %v453
      %v1111 = vpop.f32.mrb[0].mxu0
      %v1112 = vadd.f32 0.0, %v1111
      %v1113 = vpop.f32.mrb[0].mxu0
      %1114 = vmatprep.mubr.f32.mxu0 0.0
      %1115 = vmatmul.mubr.f32.gmra.mrb[0].mxu0 %v456
      %v1116 = vpop.f32.mrb[0].mxu0
      %v1117 = vadd.f32 0.0, %v1116
      %v1118 = vpop.f32.mrb[0].mxu0
      %1119 = vmatprep.mubr.f32.mxu0 0.0
      %1120 = vmatmul.mubr.f32.gmra.mrb[0].mxu0 %v459
      %v1121 = vpop.f32.mrb[0].mxu0
      %v1122 = vadd.f32 0.0, %v1121
      %v1123 = vpop.f32.mrb[0].mxu0
      %1124 = vmatprep.mubr.f32.mxu0 0.0
      %1125 = vmatmul.mubr.f32.gmra.mrb[0].mxu0 %v462
      %v1126 = vpop.f32.mrb[0].mxu0
      %v1127 = vadd.f32 0.0, %v1126
      %v1128 = vpop.f32.mrb[0].mxu0
      %1129 = vmatprep.mubr.f32.mxu0 0.0
      %1130 = vmatmul.mubr.f32.gmra.mrb[0].mxu0 %v465
      %v1131 = vpop.f32.mrb[0].mxu0
      %v1132 = vadd.f32 0.0, %v1131
      %v1133 = vpop.f32.mrb[0].mxu0
      %1134 = vdwg.mxu0
      %v1135 = vld [vmem:[#allocation2] sm:$0xff]
      %v1136 = vld [vmem:[#allocation2 + $0x8] sm:$0xff]
      %v1137 = vld [vmem:[#allocation2 + $0x10] sm:$0xff]
      %v1138 = vld [vmem:[#allocation2 + $0x18] sm:$0xff]
      %v1139 = vld [vmem:[#allocation2 + $0x20] sm:$0xff]
      %v1140 = vld [vmem:[#allocation2 + $0x28] sm:$0xff]
      %v1141 = vld [vmem:[#allocation2 + $0x30] sm:$0xff]
      %v1142 = vld [vmem:[#allocation2 + $0x38] sm:$0xff]
      %v1143 = vld [vmem:[#allocation2 + $0x40] sm:$0xff]
      %v1144 = vld [vmem:[#allocation2 + $0x48] sm:$0xff]
      %v1145 = vld [vmem:[#allocation2 + $0x50] sm:$0xff]
      %v1146 = vld [vmem:[#allocation2 + $0x58] sm:$0xff]
      %v1147 = vld [vmem:[#allocation2 + $0x60] sm:$0xff]
      %v1148 = vld [vmem:[#allocation2 + $0x68] sm:$0xff]
      %v1149 = vld [vmem:[#allocation2 + $0x70] sm:$0xff]
      %v1150 = vld [vmem:[#allocation2 + $0x78] sm:$0xff]
      %v1151 = vld [vmem:[#allocation2 + $0x80] sm:$0xff]
      %v1152 = vld [vmem:[#allocation2 + $0x88] sm:$0xff]
      %v1153 = vld [vmem:[#allocation2 + $0x90] sm:$0xff]
      %v1154 = vld [vmem:[#allocation2 + $0x98] sm:$0xff]
      %v1155 = vld [vmem:[#allocation2 + $0xa0] sm:$0xff]
      %v1156 = vld [vmem:[#allocation2 + $0xa8] sm:$0xff]
      %v1157 = vld [vmem:[#allocation2 + $0xb0] sm:$0xff]
      %v1158 = vld [vmem:[#allocation2 + $0xb8] sm:$0xff]
      %v1159 = vld [vmem:[#allocation2 + $0xc0] sm:$0xff]
      %v1160 = vld [vmem:[#allocation2 + $0xc8] sm:$0xff]
      %v1161 = vld [vmem:[#allocation2 + $0xd0] sm:$0xff]
      %v1162 = vld [vmem:[#allocation2 + $0xd8] sm:$0xff]
      %v1163 = vld [vmem:[#allocation2 + $0xe0] sm:$0xff]
      %v1164 = vld [vmem:[#allocation2 + $0xe8] sm:$0xff]
      %v1165 = vld [vmem:[#allocation2 + $0xf0] sm:$0xff]
      %v1166 = vld [vmem:[#allocation2 + $0xf8] sm:$0xff]
      %v1167 = vld [vmem:[#allocation2 + $0x100] sm:$0xff]
      %v1168 = vld [vmem:[#allocation2 + $0x108] sm:$0xff]
      %v1169 = vld [vmem:[#allocation2 + $0x110] sm:$0xff]
      %v1170 = vld [vmem:[#allocation2 + $0x118] sm:$0xff]
      %v1171 = vld [vmem:[#allocation2 + $0x120] sm:$0xff]
      %v1172 = vld [vmem:[#allocation2 + $0x128] sm:$0xff]
      %v1173 = vld [vmem:[#allocation2 + $0x130] sm:$0xff]
      %v1174 = vld [vmem:[#allocation2 + $0x138] sm:$0xff]
      %v1175 = vld [vmem:[#allocation2 + $0x140] sm:$0xff]
      %v1176 = vld [vmem:[#allocation2 + $0x148] sm:$0xff]
      %v1177 = vld [vmem:[#allocation2 + $0x150] sm:$0xff]
      %v1178 = vld [vmem:[#allocation2 + $0x158] sm:$0xff]
      %v1179 = vld [vmem:[#allocation2 + $0x160] sm:$0xff]
      %v1180 = vld [vmem:[#allocation2 + $0x168] sm:$0xff]
      %v1181 = vld [vmem:[#allocation2 + $0x170] sm:$0xff]
      %v1182 = vld [vmem:[#allocation2 + $0x178] sm:$0xff]
      %v1183 = vmin.f32 %v544, %v546
      %v1184 = vmin.f32 %v1183, %v897
      %1185 = vmin.xlane.f32.xlu0 %v1184
      %v1186 = vpop.xlane.xlu0 %1185
      %v1187 = vmin.f32 %v550, %v552
      %v1188 = vmin.f32 %v1187, %v902
      %1189 = vmin.xlane.f32.xlu0 %v1188
      %v1190 = vpop.xlane.xlu0 %1189
      %v1191 = vmin.f32 %v556, %v558
      %v1192 = vmin.f32 %v1191, %v907
      %1193 = vmin.xlane.f32.xlu0 %v1192
      %v1194 = vpop.xlane.xlu0 %1193
      %v1195 = vmin.f32 %v562, %v564
      %v1196 = vmin.f32 %v1195, %v912
      %1197 = vmin.xlane.f32.xlu0 %v1196
      %v1198 = vpop.xlane.xlu0 %1197
      %v1199 = vmin.f32 %v568, %v570
      %v1200 = vmin.f32 %v1199, %v917
      %1201 = vmin.xlane.f32.xlu0 %v1200
      %v1202 = vpop.xlane.xlu0 %1201
      %v1203 = vmin.f32 %v574, %v576
      %v1204 = vmin.f32 %v1203, %v922
      %1205 = vmin.xlane.f32.xlu0 %v1204
      %v1206 = vpop.xlane.xlu0 %1205
      %v1207 = vmin.f32 %v580, %v582
      %v1208 = vmin.f32 %v1207, %v927
      %1209 = vmin.xlane.f32.xlu0 %v1208
      %v1210 = vpop.xlane.xlu0 %1209
      %v1211 = vmin.f32 %v586, %v588
      %v1212 = vmin.f32 %v1211, %v932
      %1213 = vmin.xlane.f32.xlu0 %v1212
      %v1214 = vpop.xlane.xlu0 %1213
      %v1215 = vmin.f32 %v592, %v594
      %v1216 = vmin.f32 %v1215, %v937
      %1217 = vmin.xlane.f32.xlu0 %v1216
      %v1218 = vpop.xlane.xlu0 %1217
      %v1219 = vmin.f32 %v598, %v600
      %v1220 = vmin.f32 %v1219, %v942
      %1221 = vmin.xlane.f32.xlu0 %v1220
      %v1222 = vpop.xlane.xlu0 %1221
      %v1223 = vmin.f32 %v604, %v606
      %v1224 = vmin.f32 %v1223, %v947
      %1225 = vmin.xlane.f32.xlu0 %v1224
      %v1226 = vpop.xlane.xlu0 %1225
      %v1227 = vmin.f32 %v610, %v612
      %v1228 = vmin.f32 %v1227, %v952
      %1229 = vmin.xlane.f32.xlu0 %v1228
      %v1230 = vpop.xlane.xlu0 %1229
      %v1231 = vmin.f32 %v616, %v618
      %v1232 = vmin.f32 %v1231, %v957
      %1233 = vmin.xlane.f32.xlu0 %v1232
      %v1234 = vpop.xlane.xlu0 %1233
      %v1235 = vmin.f32 %v622, %v624
      %v1236 = vmin.f32 %v1235, %v962
      %1237 = vmin.xlane.f32.xlu0 %v1236
      %v1238 = vpop.xlane.xlu0 %1237
      %v1239 = vmin.f32 %v628, %v630
      %v1240 = vmin.f32 %v1239, %v967
      %1241 = vmin.xlane.f32.xlu0 %v1240
      %v1242 = vpop.xlane.xlu0 %1241
      %v1243 = vmin.f32 %v634, %v636
      %v1244 = vmin.f32 %v1243, %v972
      %1245 = vmin.xlane.f32.xlu0 %v1244
      %v1246 = vpop.xlane.xlu0 %1245
      %v1247 = vmin.f32 %v640, %v642
      %v1248 = vmin.f32 %v1247, %v977
      %1249 = vmin.xlane.f32.xlu0 %v1248
      %v1250 = vpop.xlane.xlu0 %1249
      %v1251 = vmin.f32 %v646, %v648
      %v1252 = vmin.f32 %v1251, %v982
      %1253 = vmin.xlane.f32.xlu0 %v1252
      %v1254 = vpop.xlane.xlu0 %1253
      %v1255 = vmin.f32 %v652, %v654
      %v1256 = vmin.f32 %v1255, %v987
      %1257 = vmin.xlane.f32.xlu0 %v1256
      %v1258 = vpop.xlane.xlu0 %1257
      %v1259 = vmin.f32 %v658, %v660
      %v1260 = vmin.f32 %v1259, %v992
      %1261 = vmin.xlane.f32.xlu0 %v1260
      %v1262 = vpop.xlane.xlu0 %1261
      %v1263 = vmin.f32 %v664, %v666
      %v1264 = vmin.f32 %v1263, %v997
      %1265 = vmin.xlane.f32.xlu0 %v1264
      %v1266 = vpop.xlane.xlu0 %1265
      %v1267 = vmin.f32 %v670, %v672
      %v1268 = vmin.f32 %v1267, %v1002
      %1269 = vmin.xlane.f32.xlu0 %v1268
      %v1270 = vpop.xlane.xlu0 %1269
      %v1271 = vmin.f32 %v676, %v678
      %v1272 = vmin.f32 %v1271, %v1007
      %1273 = vmin.xlane.f32.xlu0 %v1272
      %v1274 = vpop.xlane.xlu0 %1273
      %v1275 = vmin.f32 %v682, %v684
      %v1276 = vmin.f32 %v1275, %v1012
      %1277 = vmin.xlane.f32.xlu0 %v1276
      %v1278 = vpop.xlane.xlu0 %1277
      %v1279 = vmin.f32 %v688, %v690
      %v1280 = vmin.f32 %v1279, %v1017
      %1281 = vmin.xlane.f32.xlu0 %v1280
      %v1282 = vpop.xlane.xlu0 %1281
      %v1283 = vmin.f32 %v694, %v696
      %v1284 = vmin.f32 %v1283, %v1022
      %1285 = vmin.xlane.f32.xlu0 %v1284
      %v1286 = vpop.xlane.xlu0 %1285
      %v1287 = vmin.f32 %v700, %v702
      %v1288 = vmin.f32 %v1287, %v1027
      %1289 = vmin.xlane.f32.xlu0 %v1288
      %v1290 = vpop.xlane.xlu0 %1289
      %v1291 = vmin.f32 %v706, %v708
      %v1292 = vmin.f32 %v1291, %v1032
      %1293 = vmin.xlane.f32.xlu0 %v1292
      %v1294 = vpop.xlane.xlu0 %1293
      %v1295 = vmin.f32 %v712, %v714
      %v1296 = vmin.f32 %v1295, %v1037
      %1297 = vmin.xlane.f32.xlu0 %v1296
      %v1298 = vpop.xlane.xlu0 %1297
      %v1299 = vmin.f32 %v718, %v720
      %v1300 = vmin.f32 %v1299, %v1042
      %1301 = vmin.xlane.f32.xlu0 %v1300
      %v1302 = vpop.xlane.xlu0 %1301
      %v1303 = vmin.f32 %v724, %v726
      %v1304 = vmin.f32 %v1303, %v1047
      %1305 = vmin.xlane.f32.xlu0 %v1304
      %v1306 = vpop.xlane.xlu0 %1305
      %v1307 = vmin.f32 %v730, %v732
      %v1308 = vmin.f32 %v1307, %v1052
      %1309 = vmin.xlane.f32.xlu0 %v1308
      %v1310 = vpop.xlane.xlu0 %1309
      %v1311 = vmin.f32 %v736, %v738
      %v1312 = vmin.f32 %v1311, %v1057
      %1313 = vmin.xlane.f32.xlu0 %v1312
      %v1314 = vpop.xlane.xlu0 %1313
      %v1315 = vmin.f32 %v742, %v744
      %v1316 = vmin.f32 %v1315, %v1062
      %1317 = vmin.xlane.f32.xlu0 %v1316
      %v1318 = vpop.xlane.xlu0 %1317
      %v1319 = vmin.f32 %v748, %v750
      %v1320 = vmin.f32 %v1319, %v1067
      %1321 = vmin.xlane.f32.xlu0 %v1320
      %v1322 = vpop.xlane.xlu0 %1321
      %v1323 = vmin.f32 %v754, %v756
      %v1324 = vmin.f32 %v1323, %v1072
      %1325 = vmin.xlane.f32.xlu0 %v1324
      %v1326 = vpop.xlane.xlu0 %1325
      %v1327 = vmin.f32 %v760, %v762
      %v1328 = vmin.f32 %v1327, %v1077
      %1329 = vmin.xlane.f32.xlu0 %v1328
      %v1330 = vpop.xlane.xlu0 %1329
      %v1331 = vmin.f32 %v766, %v768
      %v1332 = vmin.f32 %v1331, %v1082
      %1333 = vmin.xlane.f32.xlu0 %v1332
      %v1334 = vpop.xlane.xlu0 %1333
      %v1335 = vmin.f32 %v772, %v774
      %v1336 = vmin.f32 %v1335, %v1087
      %1337 = vmin.xlane.f32.xlu0 %v1336
      %v1338 = vpop.xlane.xlu0 %1337
      %v1339 = vmin.f32 %v778, %v780
      %v1340 = vmin.f32 %v1339, %v1092
      %1341 = vmin.xlane.f32.xlu0 %v1340
      %v1342 = vpop.xlane.xlu0 %1341
      %v1343 = vmin.f32 %v784, %v786
      %v1344 = vmin.f32 %v1343, %v1097
      %1345 = vmin.xlane.f32.xlu0 %v1344
      %v1346 = vpop.xlane.xlu0 %1345
      %v1347 = vmin.f32 %v790, %v792
      %v1348 = vmin.f32 %v1347, %v1102
      %1349 = vmin.xlane.f32.xlu0 %v1348
      %v1350 = vpop.xlane.xlu0 %1349
      %v1351 = vmin.f32 %v796, %v798
      %v1352 = vmin.f32 %v1351, %v1107
      %1353 = vmin.xlane.f32.xlu0 %v1352
      %v1354 = vpop.xlane.xlu0 %1353
      %v1355 = vmin.f32 %v802, %v804
      %v1356 = vmin.f32 %v1355, %v1112
      %1357 = vmin.xlane.f32.xlu0 %v1356
      %v1358 = vpop.xlane.xlu0 %1357
      %v1359 = vmin.f32 %v808, %v810
      %v1360 = vmin.f32 %v1359, %v1117
      %1361 = vmin.xlane.f32.xlu0 %v1360
      %v1362 = vpop.xlane.xlu0 %1361
      %v1363 = vmin.f32 %v814, %v816
      %v1364 = vmin.f32 %v1363, %v1122
      %1365 = vmin.xlane.f32.xlu0 %v1364
      %v1366 = vpop.xlane.xlu0 %1365
      %v1367 = vmin.f32 %v820, %v822
      %v1368 = vmin.f32 %v1367, %v1127
      %1369 = vmin.xlane.f32.xlu0 %v1368
      %v1370 = vpop.xlane.xlu0 %1369
      %v1371 = vmin.f32 %v826, %v828
      %v1372 = vmin.f32 %v1371, %v1132
      %1373 = vmin.xlane.f32.xlu0 %v1372
      %v1374 = vpop.xlane.xlu0 %1373
      %v1375 = vmin.f32 %v1135, %v1186
      %v1376 = vmin.f32 %v1136, %v1190
      %v1377 = vmin.f32 %v1137, %v1194
      %v1378 = vmin.f32 %v1138, %v1198
      %v1379 = vmin.f32 %v1139, %v1202
      %v1380 = vmin.f32 %v1140, %v1206
      %v1381 = vmin.f32 %v1141, %v1210
      %v1382 = vmin.f32 %v1142, %v1214
      %v1383 = vmin.f32 %v1143, %v1218
      %v1384 = vmin.f32 %v1144, %v1222
      %v1385 = vmin.f32 %v1145, %v1226
      %v1386 = vmin.f32 %v1146, %v1230
      %v1387 = vmin.f32 %v1147, %v1234
      %v1388 = vmin.f32 %v1148, %v1238
      %v1389 = vmin.f32 %v1149, %v1242
      %v1390 = vmin.f32 %v1150, %v1246
      %v1391 = vmin.f32 %v1151, %v1250
      %v1392 = vmin.f32 %v1152, %v1254
      %v1393 = vmin.f32 %v1153, %v1258
      %v1394 = vmin.f32 %v1154, %v1262
      %v1395 = vmin.f32 %v1155, %v1266
      %v1396 = vmin.f32 %v1156, %v1270
      %v1397 = vmin.f32 %v1157, %v1274
      %v1398 = vmin.f32 %v1158, %v1278
      %v1399 = vmin.f32 %v1159, %v1282
      %v1400 = vmin.f32 %v1160, %v1286
      %v1401 = vmin.f32 %v1161, %v1290
      %v1402 = vmin.f32 %v1162, %v1294
      %v1403 = vmin.f32 %v1163, %v1298
      %v1404 = vmin.f32 %v1164, %v1302
      %v1405 = vmin.f32 %v1165, %v1306
      %v1406 = vmin.f32 %v1166, %v1310
      %v1407 = vmin.f32 %v1167, %v1314
      %v1408 = vmin.f32 %v1168, %v1318
      %v1409 = vmin.f32 %v1169, %v1322
      %v1410 = vmin.f32 %v1170, %v1326
      %v1411 = vmin.f32 %v1171, %v1330
      %v1412 = vmin.f32 %v1172, %v1334
      %v1413 = vmin.f32 %v1173, %v1338
      %v1414 = vmin.f32 %v1174, %v1342
      %v1415 = vmin.f32 %v1175, %v1346
      %v1416 = vmin.f32 %v1176, %v1350
      %v1417 = vmin.f32 %v1177, %v1354
      %v1418 = vmin.f32 %v1178, %v1358
      %v1419 = vmin.f32 %v1179, %v1362
      %v1420 = vmin.f32 %v1180, %v1366
      %v1421 = vmin.f32 %v1181, %v1370
      %v1422 = vmin.f32 %v1182, %v1374
      %vm1423 = vcmask 7168
      %1424 = vst.msk [vmem:[#allocation2] sm:$0xff] %vm1423, %v1375
      %1425 = vst.msk [vmem:[#allocation2 + $0x8] sm:$0xff] %vm1423, %v1376
      %1426 = vst.msk [vmem:[#allocation2 + $0x10] sm:$0xff] %vm1423, %v1377
      %1427 = vst.msk [vmem:[#allocation2 + $0x18] sm:$0xff] %vm1423, %v1378
      %1428 = vst.msk [vmem:[#allocation2 + $0x20] sm:$0xff] %vm1423, %v1379
      %1429 = vst.msk [vmem:[#allocation2 + $0x28] sm:$0xff] %vm1423, %v1380
      %1430 = vst.msk [vmem:[#allocation2 + $0x30] sm:$0xff] %vm1423, %v1381
      %1431 = vst.msk [vmem:[#allocation2 + $0x38] sm:$0xff] %vm1423, %v1382
      %1432 = vst.msk [vmem:[#allocation2 + $0x40] sm:$0xff] %vm1423, %v1383
      %1433 = vst.msk [vmem:[#allocation2 + $0x48] sm:$0xff] %vm1423, %v1384
      %1434 = vst.msk [vmem:[#allocation2 + $0x50] sm:$0xff] %vm1423, %v1385
      %1435 = vst.msk [vmem:[#allocation2 + $0x58] sm:$0xff] %vm1423, %v1386
      %1436 = vst.msk [vmem:[#allocation2 + $0x60] sm:$0xff] %vm1423, %v1387
      %1437 = vst.msk [vmem:[#allocation2 + $0x68] sm:$0xff] %vm1423, %v1388
      %1438 = vst.msk [vmem:[#allocation2 + $0x70] sm:$0xff] %vm1423, %v1389
      %1439 = vst.msk [vmem:[#allocation2 + $0x78] sm:$0xff] %vm1423, %v1390
      %1440 = vst.msk [vmem:[#allocation2 + $0x80] sm:$0xff] %vm1423, %v1391
      %1441 = vst.msk [vmem:[#allocation2 + $0x88] sm:$0xff] %vm1423, %v1392
      %1442 = vst.msk [vmem:[#allocation2 + $0x90] sm:$0xff] %vm1423, %v1393
      %1443 = vst.msk [vmem:[#allocation2 + $0x98] sm:$0xff] %vm1423, %v1394
      %1444 = vst.msk [vmem:[#allocation2 + $0xa0] sm:$0xff] %vm1423, %v1395
      %1445 = vst.msk [vmem:[#allocation2 + $0xa8] sm:$0xff] %vm1423, %v1396
      %1446 = vst.msk [vmem:[#allocation2 + $0xb0] sm:$0xff] %vm1423, %v1397
      %1447 = vst.msk [vmem:[#allocation2 + $0xb8] sm:$0xff] %vm1423, %v1398
      %1448 = vst.msk [vmem:[#allocation2 + $0xc0] sm:$0xff] %vm1423, %v1399
      %1449 = vst.msk [vmem:[#allocation2 + $0xc8] sm:$0xff] %vm1423, %v1400
      %1450 = vst.msk [vmem:[#allocation2 + $0xd0] sm:$0xff] %vm1423, %v1401
      %1451 = vst.msk [vmem:[#allocation2 + $0xd8] sm:$0xff] %vm1423, %v1402
      %1452 = vst.msk [vmem:[#allocation2 + $0xe0] sm:$0xff] %vm1423, %v1403
      %1453 = vst.msk [vmem:[#allocation2 + $0xe8] sm:$0xff] %vm1423, %v1404
      %1454 = vst.msk [vmem:[#allocation2 + $0xf0] sm:$0xff] %vm1423, %v1405
      %1455 = vst.msk [vmem:[#allocation2 + $0xf8] sm:$0xff] %vm1423, %v1406
      %1456 = vst.msk [vmem:[#allocation2 + $0x100] sm:$0xff] %vm1423, %v1407
      %1457 = vst.msk [vmem:[#allocation2 + $0x108] sm:$0xff] %vm1423, %v1408
      %1458 = vst.msk [vmem:[#allocation2 + $0x110] sm:$0xff] %vm1423, %v1409
      %1459 = vst.msk [vmem:[#allocation2 + $0x118] sm:$0xff] %vm1423, %v1410
      %1460 = vst.msk [vmem:[#allocation2 + $0x120] sm:$0xff] %vm1423, %v1411
      %1461 = vst.msk [vmem:[#allocation2 + $0x128] sm:$0xff] %vm1423, %v1412
      %1462 = vst.msk [vmem:[#allocation2 + $0x130] sm:$0xff] %vm1423, %v1413
      %1463 = vst.msk [vmem:[#allocation2 + $0x138] sm:$0xff] %vm1423, %v1414
      %1464 = vst.msk [vmem:[#allocation2 + $0x140] sm:$0xff] %vm1423, %v1415
      %1465 = vst.msk [vmem:[#allocation2 + $0x148] sm:$0xff] %vm1423, %v1416
      %1466 = vst.msk [vmem:[#allocation2 + $0x150] sm:$0xff] %vm1423, %v1417
      %1467 = vst.msk [vmem:[#allocation2 + $0x158] sm:$0xff] %vm1423, %v1418
      %1468 = vst.msk [vmem:[#allocation2 + $0x160] sm:$0xff] %vm1423, %v1419
      %1469 = vst.msk [vmem:[#allocation2 + $0x168] sm:$0xff] %vm1423, %v1420
      %1470 = vst.msk [vmem:[#allocation2 + $0x170] sm:$0xff] %vm1423, %v1421
      %1471 = vst.msk [vmem:[#allocation2 + $0x178] sm:$0xff] %vm1423, %v1422
      %v1472 = vmin.f32 %v544, %v556
      %v1473 = vmin.f32 %v550, %v562
      %v1474 = vmin.f32 %v1472, %v568
      %v1475 = vmin.f32 %v1473, %v574
      %v1476 = vmin.f32 %v1474, %v580
      %v1477 = vmin.f32 %v1475, %v586
      %v1478 = vmin.f32 %v1476, %v592
      %v1479 = vmin.f32 %v1477, %v598
      %v1480 = vmin.f32 %v1478, %v604
      %v1481 = vmin.f32 %v1479, %v610
      %v1482 = vmin.f32 %v1480, %v616
      %v1483 = vmin.f32 %v1481, %v622
      %v1484 = vmin.f32 %v1482, %v628
      %v1485 = vmin.f32 %v1483, %v634
      %v1486 = vmin.f32 %v1484, %v640
      %v1487 = vmin.f32 %v1485, %v646
      %v1488 = vmin.f32 %v1486, %v652
      %v1489 = vmin.f32 %v1487, %v658
      %v1490 = vmin.f32 %v1488, %v664
      %v1491 = vmin.f32 %v1489, %v670
      %v1492 = vmin.f32 %v1490, %v676
      %v1493 = vmin.f32 %v1491, %v682
      %v1494 = vmin.f32 %v1492, %v688
      %v1495 = vmin.f32 %v1493, %v694
      %v1496 = vmin.f32 %v1494, %v700
      %v1497 = vmin.f32 %v1495, %v706
      %v1498 = vmin.f32 %v1496, %v712
      %v1499 = vmin.f32 %v1497, %v718
      %v1500 = vmin.f32 %v1498, %v724
      %v1501 = vmin.f32 %v1499, %v730
      %v1502 = vmin.f32 %v1500, %v736
      %v1503 = vmin.f32 %v1501, %v742
      %v1504 = vmin.f32 %v1502, %v748
      %v1505 = vmin.f32 %v1503, %v754
      %v1506 = vmin.f32 %v1504, %v760
      %v1507 = vmin.f32 %v1505, %v766
      %v1508 = vmin.f32 %v1506, %v772
      %v1509 = vmin.f32 %v1507, %v778
      %v1510 = vmin.f32 %v1508, %v784
      %v1511 = vmin.f32 %v1509, %v790
      %v1512 = vmin.f32 %v1510, %v796
      %v1513 = vmin.f32 %v1511, %v802
      %v1514 = vmin.f32 %v1512, %v808
      %v1515 = vmin.f32 %v1513, %v814
      %v1516 = vmin.f32 %v1514, %v820
      %v1517 = vmin.f32 %v1515, %v826
      %v1518 = vmin.f32 %v1516, %v1517
      %v1519 = vrot.slane %v1518, 4
      %v1520 = vmin.f32 %v1518, %v1519
      %v1521 = vrot.slane %v1520, 2
      %v1522 = vmin.f32 %v1520, %v1521
      %v1523 = vrot.slane %v1522, 1
      %v1524 = vmin.f32 %v1522, %v1523
      %v1525 = vmin.f32 %v546, %v558
      %v1526 = vmin.f32 %v552, %v564
      %v1527 = vmin.f32 %v1525, %v570
      %v1528 = vmin.f32 %v1526, %v576
      %v1529 = vmin.f32 %v1527, %v582
      %v1530 = vmin.f32 %v1528, %v588
      %v1531 = vmin.f32 %v1529, %v594
      %v1532 = vmin.f32 %v1530, %v600
      %v1533 = vmin.f32 %v1531, %v606
      %v1534 = vmin.f32 %v1532, %v612
      %v1535 = vmin.f32 %v1533, %v618
      %v1536 = vmin.f32 %v1534, %v624
      %v1537 = vmin.f32 %v1535, %v630
      %v1538 = vmin.f32 %v1536, %v636
      %v1539 = vmin.f32 %v1537, %v642
      %v1540 = vmin.f32 %v1538, %v648
      %v1541 = vmin.f32 %v1539, %v654
      %v1542 = vmin.f32 %v1540, %v660
      %v1543 = vmin.f32 %v1541, %v666
      %v1544 = vmin.f32 %v1542, %v672
      %v1545 = vmin.f32 %v1543, %v678
      %v1546 = vmin.f32 %v1544, %v684
      %v1547 = vmin.f32 %v1545, %v690
      %v1548 = vmin.f32 %v1546, %v696
      %v1549 = vmin.f32 %v1547, %v702
      %v1550 = vmin.f32 %v1548, %v708
      %v1551 = vmin.f32 %v1549, %v714
      %v1552 = vmin.f32 %v1550, %v720
      %v1553 = vmin.f32 %v1551, %v726
      %v1554 = vmin.f32 %v1552, %v732
      %v1555 = vmin.f32 %v1553, %v738
      %v1556 = vmin.f32 %v1554, %v744
      %v1557 = vmin.f32 %v1555, %v750
      %v1558 = vmin.f32 %v1556, %v756
      %v1559 = vmin.f32 %v1557, %v762
      %v1560 = vmin.f32 %v1558, %v768
      %v1561 = vmin.f32 %v1559, %v774
      %v1562 = vmin.f32 %v1560, %v780
      %v1563 = vmin.f32 %v1561, %v786
      %v1564 = vmin.f32 %v1562, %v792
      %v1565 = vmin.f32 %v1563, %v798
      %v1566 = vmin.f32 %v1564, %v804
      %v1567 = vmin.f32 %v1565, %v810
      %v1568 = vmin.f32 %v1566, %v816
      %v1569 = vmin.f32 %v1567, %v822
      %v1570 = vmin.f32 %v1568, %v828
      %v1571 = vmin.f32 %v1569, %v1570
      %v1572 = vrot.slane %v1571, 4
      %v1573 = vmin.f32 %v1571, %v1572
      %v1574 = vrot.slane %v1573, 2
      %v1575 = vmin.f32 %v1573, %v1574
      %v1576 = vrot.slane %v1575, 1
      %v1577 = vmin.f32 %v1575, %v1576
      %v1578 = vmin.f32 %v897, %v907
      %v1579 = vmin.f32 %v902, %v912
      %v1580 = vmin.f32 %v1578, %v917
      %v1581 = vmin.f32 %v1579, %v922
      %v1582 = vmin.f32 %v1580, %v927
      %v1583 = vmin.f32 %v1581, %v932
      %v1584 = vmin.f32 %v1582, %v937
      %v1585 = vmin.f32 %v1583, %v942
      %v1586 = vmin.f32 %v1584, %v947
      %v1587 = vmin.f32 %v1585, %v952
      %v1588 = vmin.f32 %v1586, %v957
      %v1589 = vmin.f32 %v1587, %v962
      %v1590 = vmin.f32 %v1588, %v967
      %v1591 = vmin.f32 %v1589, %v972
      %v1592 = vmin.f32 %v1590, %v977
      %v1593 = vmin.f32 %v1591, %v982
      %v1594 = vmin.f32 %v1592, %v987
      %v1595 = vmin.f32 %v1593, %v992
      %v1596 = vmin.f32 %v1594, %v997
      %v1597 = vmin.f32 %v1595, %v1002
      %v1598 = vmin.f32 %v1596, %v1007
      %v1599 = vmin.f32 %v1597, %v1012
      %v1600 = vmin.f32 %v1598, %v1017
      %v1601 = vmin.f32 %v1599, %v1022
      %v1602 = vmin.f32 %v1600, %v1027
      %v1603 = vmin.f32 %v1601, %v1032
      %v1604 = vmin.f32 %v1602, %v1037
      %v1605 = vmin.f32 %v1603, %v1042
      %v1606 = vmin.f32 %v1604, %v1047
      %v1607 = vmin.f32 %v1605, %v1052
      %v1608 = vmin.f32 %v1606, %v1057
      %v1609 = vmin.f32 %v1607, %v1062
      %v1610 = vmin.f32 %v1608, %v1067
      %v1611 = vmin.f32 %v1609, %v1072
      %v1612 = vmin.f32 %v1610, %v1077
      %v1613 = vmin.f32 %v1611, %v1082
      %v1614 = vmin.f32 %v1612, %v1087
      %v1615 = vmin.f32 %v1613, %v1092
      %v1616 = vmin.f32 %v1614, %v1097
      %v1617 = vmin.f32 %v1615, %v1102
      %v1618 = vmin.f32 %v1616, %v1107
      %v1619 = vmin.f32 %v1617, %v1112
      %v1620 = vmin.f32 %v1618, %v1117
      %v1621 = vmin.f32 %v1619, %v1122
      %v1622 = vmin.f32 %v1620, %v1127
      %v1623 = vmin.f32 %v1621, %v1132
      %v1624 = vmin.f32 %v1622, %v1623
      %v1625 = vrot.slane %v1624, 4
      %v1626 = vmin.f32 %v1624, %v1625
      %v1627 = vrot.slane %v1626, 2
      %v1628 = vmin.f32 %v1626, %v1627
      %v1629 = vrot.slane %v1628, 1
      %v1630 = vmin.f32 %v1628, %v1629
      // Predicated region
      $region37: #{chamfer_loss.1} parent=27 // pred_check
        %p1631 = pneg %p211
      $region38: #{chamfer_loss.1} parent=27 // pred_check_branch
        %1633 = sbr.rel (%p1631) target = $region40
      $region39: #{chamfer_loss.1} parent=27 // pred_region
        %v1637 = vcombine.low %v1524, %v1577
        %v1639 = vunpack.c.l.s4 1966171168
        %v1640 = vunpack.c.0.s8 %v1639
        %v1641 = vlaneseq
        %v1642 = vshrl.u32 %v1641, 7
        %v1643 = vsub.s32 %v1640, %v1642
        %v1644 = vrot.slane %v1637, %v1643
        %v1646 = vunpack.c.l.s4 1966171168
        %v1647 = vunpack.c.0.s8 %v1646
        %v1648 = vlaneseq
        %v1649 = vshrl.u32 %v1648, 7
        %v1650 = vsub.s32 %v1647, %v1649
        %v1651 = vrot.slane %v1630, %v1650
        %v1652 = vcombine.low %v1644, %v1651
        %v1654 = vunpack.c.l.s4 1966171168
        %v1655 = vunpack.c.0.s8 %v1654
        %v1656 = vlaneseq
        %v1657 = vshrl.u32 %v1656, 7
        %v1658 = vsub.s32 %v1655, %v1657
        %v1659 = vrot.slane %v1652, %v1658
        %s1661 = smul.u32 %s20, 3
        %s1662 = scalar_lea.vmem [#allocation3], %s1661
        %v1663 = vlaneseq
        %vm1664 = vcmp.ge.s32.totalorder %v1663, 0
        %vm1665 = vcmp.lt.s32.totalorder %v1663, 384
        %vm1666 = vmand %vm1664, %vm1665
        %1667 = vst.msk [vmem:[%s1662] sm:$0x7] %vm1666, %v1659
      $region40: #{chamfer_loss.1} parent=27 // pred_fallthru
        _
      %p1668 = scmp.gt.s32.totalorder %s19, 0
      // Predicated region
      $region41: #{chamfer_loss.1} parent=27 // pred_check
        %p1669 = pneg %p1668
      $region42: #{chamfer_loss.1} parent=27 // pred_check_branch
        %1671 = sbr.rel (%p1669) target = $region44
      $region43: #{chamfer_loss.1} parent=27 // pred_region
        %s1672 = smul.u32 %s20, 3
        %s1673 = scalar_lea.vmem [#allocation3], %s1672
        %v1674 = vld [vmem:[%s1673] sm:$0x7]
        %v1678 = vcombine.low %v1524, %v1577
        %v1680 = vunpack.c.l.s4 1966171168
        %v1681 = vunpack.c.0.s8 %v1680
        %v1682 = vlaneseq
        %v1683 = vshrl.u32 %v1682, 7
        %v1684 = vsub.s32 %v1681, %v1683
        %v1685 = vrot.slane %v1678, %v1684
        %v1687 = vunpack.c.l.s4 1966171168
        %v1688 = vunpack.c.0.s8 %v1687
        %v1689 = vlaneseq
        %v1690 = vshrl.u32 %v1689, 7
        %v1691 = vsub.s32 %v1688, %v1690
        %v1692 = vrot.slane %v1630, %v1691
        %v1693 = vcombine.low %v1685, %v1692
        %v1695 = vunpack.c.l.s4 1966171168
        %v1696 = vunpack.c.0.s8 %v1695
        %v1697 = vlaneseq
        %v1698 = vshrl.u32 %v1697, 7
        %v1699 = vsub.s32 %v1696, %v1698
        %v1700 = vrot.slane %v1693, %v1699
        %v1702 = vmin.f32 %v1674, %v1700
        %v1703 = vlaneseq
        %vm1704 = vcmp.ge.s32.totalorder %v1703, 0
        %vm1705 = vcmp.lt.s32.totalorder %v1703, 384
        %vm1706 = vmand %vm1704, %vm1705
        %1707 = vst.msk [vmem:[%s1673] sm:$0x7] %vm1706, %v1702
      $region44: #{chamfer_loss.1} parent=27 // pred_fallthru
        _
      %v1708 = vlaneseq
      %v1709 = vand.u32 %v1708, 127
      // Predicated region
      $region45: #{chamfer_loss.1} parent=27 // pred_check
        %p1710 = pneg %p212
      $region46: #{chamfer_loss.1} parent=27 // pred_check_branch
        %1712 = sbr.rel (%p1710) target = $region48
      $region47: #{chamfer_loss.1} parent=27 // pred_region
        %v1713 = vld [vmem:[#allocation2] sm:$0xff]
        %v1714 = vld [vmem:[#allocation2 + $0x8] sm:$0xff]
        %v1715 = vld [vmem:[#allocation2 + $0x10] sm:$0xff]
        %v1716 = vld [vmem:[#allocation2 + $0x18] sm:$0xff]
        %v1717 = vld [vmem:[#allocation2 + $0x20] sm:$0xff]
        %v1718 = vld [vmem:[#allocation2 + $0x28] sm:$0xff]
        %v1719 = vld [vmem:[#allocation2 + $0x30] sm:$0xff]
        %v1720 = vld [vmem:[#allocation2 + $0x38] sm:$0xff]
        %v1721 = vld [vmem:[#allocation2 + $0x40] sm:$0xff]
        %v1722 = vld [vmem:[#allocation2 + $0x48] sm:$0xff]
        %v1723 = vld [vmem:[#allocation2 + $0x50] sm:$0xff]
        %v1724 = vld [vmem:[#allocation2 + $0x58] sm:$0xff]
        %v1725 = vld [vmem:[#allocation2 + $0x60] sm:$0xff]
        %v1726 = vld [vmem:[#allocation2 + $0x68] sm:$0xff]
        %v1727 = vld [vmem:[#allocation2 + $0x70] sm:$0xff]
        %v1728 = vld [vmem:[#allocation2 + $0x78] sm:$0xff]
        %v1729 = vld [vmem:[#allocation2 + $0x80] sm:$0xff]
        %v1730 = vld [vmem:[#allocation2 + $0x88] sm:$0xff]
        %v1731 = vld [vmem:[#allocation2 + $0x90] sm:$0xff]
        %v1732 = vld [vmem:[#allocation2 + $0x98] sm:$0xff]
        %v1733 = vld [vmem:[#allocation2 + $0xa0] sm:$0xff]
        %v1734 = vld [vmem:[#allocation2 + $0xa8] sm:$0xff]
        %v1735 = vld [vmem:[#allocation2 + $0xb0] sm:$0xff]
        %v1736 = vld [vmem:[#allocation2 + $0xb8] sm:$0xff]
        %v1737 = vld [vmem:[#allocation2 + $0xc0] sm:$0xff]
        %v1738 = vld [vmem:[#allocation2 + $0xc8] sm:$0xff]
        %v1739 = vld [vmem:[#allocation2 + $0xd0] sm:$0xff]
        %v1740 = vld [vmem:[#allocation2 + $0xd8] sm:$0xff]
        %v1741 = vld [vmem:[#allocation2 + $0xe0] sm:$0xff]
        %v1742 = vld [vmem:[#allocation2 + $0xe8] sm:$0xff]
        %v1743 = vld [vmem:[#allocation2 + $0xf0] sm:$0xff]
        %v1744 = vld [vmem:[#allocation2 + $0xf8] sm:$0xff]
        %v1745 = vld [vmem:[#allocation2 + $0x100] sm:$0xff]
        %v1746 = vld [vmem:[#allocation2 + $0x108] sm:$0xff]
        %v1747 = vld [vmem:[#allocation2 + $0x110] sm:$0xff]
        %v1748 = vld [vmem:[#allocation2 + $0x118] sm:$0xff]
        %v1749 = vld [vmem:[#allocation2 + $0x120] sm:$0xff]
        %v1750 = vld [vmem:[#allocation2 + $0x128] sm:$0xff]
        %v1751 = vld [vmem:[#allocation2 + $0x130] sm:$0xff]
        %v1752 = vld [vmem:[#allocation2 + $0x138] sm:$0xff]
        %v1753 = vld [vmem:[#allocation2 + $0x140] sm:$0xff]
        %v1754 = vld [vmem:[#allocation2 + $0x148] sm:$0xff]
        %v1755 = vld [vmem:[#allocation2 + $0x150] sm:$0xff]
        %v1756 = vld [vmem:[#allocation2 + $0x158] sm:$0xff]
        %v1757 = vld [vmem:[#allocation2 + $0x160] sm:$0xff]
        %v1758 = vld [vmem:[#allocation2 + $0x168] sm:$0xff]
        %v1759 = vld [vmem:[#allocation2 + $0x170] sm:$0xff]
        %v1760 = vld [vmem:[#allocation2 + $0x178] sm:$0xff]
        %v1761 = vmax.f32 %v1713, 0.0
        %v1762 = vmax.f32 %v1714, 0.0
        %v1763 = vmax.f32 %v1715, 0.0
        %v1764 = vmax.f32 %v1716, 0.0
        %v1765 = vmax.f32 %v1717, 0.0
        %v1766 = vmax.f32 %v1718, 0.0
        %v1767 = vmax.f32 %v1719, 0.0
        %v1768 = vmax.f32 %v1720, 0.0
        %v1769 = vmax.f32 %v1721, 0.0
        %v1770 = vmax.f32 %v1722, 0.0
        %v1771 = vmax.f32 %v1723, 0.0
        %v1772 = vmax.f32 %v1724, 0.0
        %v1773 = vmax.f32 %v1725, 0.0
        %v1774 = vmax.f32 %v1726, 0.0
        %v1775 = vmax.f32 %v1727, 0.0
        %v1776 = vmax.f32 %v1728, 0.0
        %v1777 = vmax.f32 %v1729, 0.0
        %v1778 = vmax.f32 %v1730, 0.0
        %v1779 = vmax.f32 %v1731, 0.0
        %v1780 = vmax.f32 %v1732, 0.0
        %v1781 = vmax.f32 %v1733, 0.0
        %v1782 = vmax.f32 %v1734, 0.0
        %v1783 = vmax.f32 %v1735, 0.0
        %v1784 = vmax.f32 %v1736, 0.0
        %v1785 = vmax.f32 %v1737, 0.0
        %v1786 = vmax.f32 %v1738, 0.0
        %v1787 = vmax.f32 %v1739, 0.0
        %v1788 = vmax.f32 %v1740, 0.0
        %v1789 = vmax.f32 %v1741, 0.0
        %v1790 = vmax.f32 %v1742, 0.0
        %v1791 = vmax.f32 %v1743, 0.0
        %v1792 = vmax.f32 %v1744, 0.0
        %v1793 = vmax.f32 %v1745, 0.0
        %v1794 = vmax.f32 %v1746, 0.0
        %v1795 = vmax.f32 %v1747, 0.0
        %v1796 = vmax.f32 %v1748, 0.0
        %v1797 = vmax.f32 %v1749, 0.0
        %v1798 = vmax.f32 %v1750, 0.0
        %v1799 = vmax.f32 %v1751, 0.0
        %v1800 = vmax.f32 %v1752, 0.0
        %v1801 = vmax.f32 %v1753, 0.0
        %v1802 = vmax.f32 %v1754, 0.0
        %v1803 = vmax.f32 %v1755, 0.0
        %v1804 = vmax.f32 %v1756, 0.0
        %v1805 = vmax.f32 %v1757, 0.0
        %v1806 = vmax.f32 %v1758, 0.0
        %v1807 = vmax.f32 %v1759, 0.0
        %v1808 = vmax.f32 %v1760, 0.0
        %v1809 = vsel %vm1423, %v1761, 0.0
        %v1810 = vsel %vm1423, %v1762, 0.0
        %v1811 = vadd.f32 %v1809, %v1810
        %v1812 = vsel %vm1423, %v1763, 0.0
        %v1813 = vadd.f32 %v1811, %v1812
        %v1814 = vsel %vm1423, %v1764, 0.0
        %v1815 = vadd.f32 %v1813, %v1814
        %v1816 = vsel %vm1423, %v1765, 0.0
        %v1817 = vadd.f32 %v1815, %v1816
        %v1818 = vsel %vm1423, %v1766, 0.0
        %v1819 = vadd.f32 %v1817, %v1818
        %v1820 = vsel %vm1423, %v1767, 0.0
        %v1821 = vadd.f32 %v1819, %v1820
        %v1822 = vsel %vm1423, %v1768, 0.0
        %v1823 = vadd.f32 %v1821, %v1822
        %v1824 = vsel %vm1423, %v1769, 0.0
        %v1825 = vadd.f32 %v1823, %v1824
        %v1826 = vsel %vm1423, %v1770, 0.0
        %v1827 = vadd.f32 %v1825, %v1826
        %v1828 = vsel %vm1423, %v1771, 0.0
        %v1829 = vadd.f32 %v1827, %v1828
        %v1830 = vsel %vm1423, %v1772, 0.0
        %v1831 = vadd.f32 %v1829, %v1830
        %v1832 = vsel %vm1423, %v1773, 0.0
        %v1833 = vadd.f32 %v1831, %v1832
        %v1834 = vsel %vm1423, %v1774, 0.0
        %v1835 = vadd.f32 %v1833, %v1834
        %v1836 = vsel %vm1423, %v1775, 0.0
        %v1837 = vadd.f32 %v1835, %v1836
        %v1838 = vsel %vm1423, %v1776, 0.0
        %v1839 = vadd.f32 %v1837, %v1838
        %v1840 = vsel %vm1423, %v1777, 0.0
        %v1841 = vadd.f32 %v1839, %v1840
        %v1842 = vsel %vm1423, %v1778, 0.0
        %v1843 = vadd.f32 %v1841, %v1842
        %v1844 = vsel %vm1423, %v1779, 0.0
        %v1845 = vadd.f32 %v1843, %v1844
        %v1846 = vsel %vm1423, %v1780, 0.0
        %v1847 = vadd.f32 %v1845, %v1846
        %v1848 = vsel %vm1423, %v1781, 0.0
        %v1849 = vadd.f32 %v1847, %v1848
        %v1850 = vsel %vm1423, %v1782, 0.0
        %v1851 = vadd.f32 %v1849, %v1850
        %v1852 = vsel %vm1423, %v1783, 0.0
        %v1853 = vadd.f32 %v1851, %v1852
        %v1854 = vsel %vm1423, %v1784, 0.0
        %v1855 = vadd.f32 %v1853, %v1854
        %v1856 = vsel %vm1423, %v1785, 0.0
        %v1857 = vadd.f32 %v1855, %v1856
        %v1858 = vsel %vm1423, %v1786, 0.0
        %v1859 = vadd.f32 %v1857, %v1858
        %v1860 = vsel %vm1423, %v1787, 0.0
        %v1861 = vadd.f32 %v1859, %v1860
        %v1862 = vsel %vm1423, %v1788, 0.0
        %v1863 = vadd.f32 %v1861, %v1862
        %v1864 = vsel %vm1423, %v1789, 0.0
        %v1865 = vadd.f32 %v1863, %v1864
        %v1866 = vsel %vm1423, %v1790, 0.0
        %v1867 = vadd.f32 %v1865, %v1866
        %v1868 = vsel %vm1423, %v1791, 0.0
        %v1869 = vadd.f32 %v1867, %v1868
        %v1870 = vsel %vm1423, %v1792, 0.0
        %v1871 = vadd.f32 %v1869, %v1870
        %v1872 = vsel %vm1423, %v1793, 0.0
        %v1873 = vadd.f32 %v1871, %v1872
        %v1874 = vsel %vm1423, %v1794, 0.0
        %v1875 = vadd.f32 %v1873, %v1874
        %v1876 = vsel %vm1423, %v1795, 0.0
        %v1877 = vadd.f32 %v1875, %v1876
        %v1878 = vsel %vm1423, %v1796, 0.0
        %v1879 = vadd.f32 %v1877, %v1878
        %v1880 = vsel %vm1423, %v1797, 0.0
        %v1881 = vadd.f32 %v1879, %v1880
        %v1882 = vsel %vm1423, %v1798, 0.0
        %v1883 = vadd.f32 %v1881, %v1882
        %v1884 = vsel %vm1423, %v1799, 0.0
        %v1885 = vadd.f32 %v1883, %v1884
        %v1886 = vsel %vm1423, %v1800, 0.0
        %v1887 = vadd.f32 %v1885, %v1886
        %v1888 = vsel %vm1423, %v1801, 0.0
        %v1889 = vadd.f32 %v1887, %v1888
        %v1890 = vsel %vm1423, %v1802, 0.0
        %v1891 = vadd.f32 %v1889, %v1890
        %v1892 = vsel %vm1423, %v1803, 0.0
        %v1893 = vadd.f32 %v1891, %v1892
        %v1894 = vsel %vm1423, %v1804, 0.0
        %v1895 = vadd.f32 %v1893, %v1894
        %v1896 = vsel %vm1423, %v1805, 0.0
        %v1897 = vadd.f32 %v1895, %v1896
        %v1898 = vsel %vm1423, %v1806, 0.0
        %v1899 = vadd.f32 %v1897, %v1898
        %v1900 = vsel %vm1423, %v1807, 0.0
        %v1901 = vadd.f32 %v1899, %v1900
        %v1902 = vsel %vm1423, %v1808, 0.0
        %v1903 = vadd.f32 %v1901, %v1902
        %v1904 = vrot.slane %v1903, 4
        %v1905 = vadd.f32 %v1903, %v1904
        %v1906 = vrot.slane %v1905, 2
        %v1907 = vadd.f32 %v1905, %v1906
        %v1908 = vrot.slane %v1907, 1
        %v1909 = vadd.f32 %v1907, %v1908
        %v1910 = vld [vmem:[%s210] sm:$0x1]
        %vm1911 = vcmp.eq.s32.totalorder %v1709, 0
        %1913 = vset.pattern.permute.xlu0 0
        %1914 = vperm.xlu0 %1913, %v1909
        %v1915 = vpop.permute.xlu0 %1914
        %v1917 = vsel %vm1911, %v1915, 0.0
        %v1918 = vadd.f32 %v1910, %v1917
        %vm1919 = vcmask 8192
        %1920 = vst.msk [vmem:[%s210] sm:$0x1] %vm1919, %v1918
      $region48: #{chamfer_loss.1} parent=27 // pred_fallthru
        _
      // Predicated region
      $region49: #{chamfer_loss.1} parent=27 // pred_check
        %p1921 = pneg %p211
      $region50: #{chamfer_loss.1} parent=27 // pred_check_branch
        %1923 = sbr.rel (%p1921) target = $region52
      $region51: #{chamfer_loss.1} parent=27 // pred_region
        %s1924 = smul.u32 %s20, 3
        %s1925 = scalar_lea.vmem [#allocation3], %s1924
        %v1926 = vld [vmem:[%s1925] sm:$0x7]
        %v1927 = vmax.f32 %v1926, 0.0
        %v1929 = vlaneseq
        %v1930 = vshrl.u32 %v1929, 7
        %v1931 = vsub.s32 0, %v1930
        %v1932 = vrot.slane %v1927, %v1931
        %v1933 = vlaneseq
        %v1934 = vshrl.u32 %v1933, 7
        %v1935 = vsub.s32 1, %v1934
        %v1936 = vrot.slane %v1927, %v1935
        %v1937 = vlaneseq
        %v1938 = vshrl.u32 %v1937, 7
        %v1939 = vsub.s32 2, %v1938
        %v1940 = vrot.slane %v1927, %v1939
        %vm1944 = vcmask 1040384
        %v1945 = vsel %vm1944, %v1932, 0.0
        %v1946 = vsel %vm1944, %v1936, 0.0
        %v1947 = vadd.f32 %v1945, %v1946
        %v1948 = vsel %vm1944, %v1940, 0.0
        %v1949 = vadd.f32 %v1947, %v1948
        %1950 = vadd.xlane.f32.xlu0 %v1949
        %v1951 = vpop.xlane.xlu0 %1950
        %v1952 = vld [vmem:[%s210] sm:$0x1]
        %vm1953 = vcmp.eq.s32.totalorder %v1709, 1
        %v1954 = vsel %vm1953, %v1951, 0.0
        %v1955 = vadd.f32 %v1952, %v1954
        %vm1956 = vcmask 8192
        %1957 = vst.msk [vmem:[%s210] sm:$0x1] %vm1956, %v1955
      $region52: #{chamfer_loss.1} parent=27 // pred_fallthru
        _
      %p1958 = scmp.lt.s32.totalorder %s18, 1
      %s1959 = scalar_select %p1958, %s18, 1
      %s1960 = scalar_lea.vmem %s2, %s1959
      // Predicated region
      $region53: #{chamfer_loss.1} parent=27 // pred_check
        %p1961 = pneg %p106
      $region54: #{chamfer_loss.1} parent=27 // pred_check_branch
        %1963 = sbr.rel (%p1961) target = $region56
      $region55: #{chamfer_loss.1} parent=27 // pred_region
        _
      $region56: #{chamfer_loss.1} parent=27 // pred_fallthru
        _
    $region28: #{chamfer_loss.1} parent=5 // pred_fallthru
      _
    %p1964 = scmp.le.s32.totalorder 2, %s8
    // Predicated region
    $region57: #{chamfer_loss.1} parent=5 // pred_check
      %p1965 = pneg %p1964
    $region58: #{chamfer_loss.1} parent=5 // pred_check_branch
      %1967 = sbr.rel (%p1965) target = $region60
    $region59: #{chamfer_loss.1} parent=5 // pred_region
      %s1968 = ssub.s32 %s8, 2
      // Predicated region
      $region61: #{chamfer_loss.1} parent=59 // pred_check
        %p1969 = pneg %p112
      $region62: #{chamfer_loss.1} parent=59 // pred_check_branch
        %1971 = sbr.rel (%p1969) target = $region64
      $region63: #{chamfer_loss.1} parent=59 // pred_region
        %p1972 = scmp.lt.s32.totalorder %s21, 1
        %s1973 = scalar_select %p1972, %s21, 1
        %s1974 = scalar_lea.vmem %s2, %s1973
      $region64: #{chamfer_loss.1} parent=59 // pred_fallthru
        _
    $region60: #{chamfer_loss.1} parent=5 // pred_fallthru
      _
  $region6: #{chamfer_loss.1} parent=0 // loop_footer
    %s12 = sadd.s32 1, %s8
  $region7: #{chamfer_loss.1} parent=0 // loop_footer_branch
    %7 = sbr.rel target = $region3
  $region8: #{chamfer_loss.1} parent=0 // loop_exit
    _

</llo_original>
